<compile_context>
chip_gen: v7x
topology: tpu7x:2x2x1
jax: 0.10.0
libtpu: 0.0.40
codegen_flags: <defaults>
</compile_context>

<pallas_src>
import functools

import jax
import jax.numpy as jnp
from jax.experimental import pallas as pl
from jax.experimental.pallas import tpu as pltpu


# ---------------------------------------------------------------------------
# helpers
# ---------------------------------------------------------------------------
def _round_up(x, m):
    return (x + m - 1) // m * m


def _pad_rows(x, n_pad):
    n = x.shape[0]
    return x if n_pad == n else jnp.pad(x, ((0, n_pad - n), (0, 0)))


def _row_tile(rows, max_tile):
    """Row tile: multiple of 8, <= max_tile, and (when rows allow it) small
    enough that the row grid has >= 2 steps so both v7x TensorCores get work."""
    if rows <= 8:
        return 8
    half = _round_up((rows + 1) // 2, 8)
    return max(8, min(max_tile, half))


def _cparams(*sem):
    # 32 MiB scoped VMEM: matches the v6e/v7x default and raises v5e's 16 MiB
    # default so the larger row tiles never shrink the pipeline there.
    return pltpu.CompilerParams(dimension_semantics=tuple(sem),
                                vmem_limit_bytes=32 * 1024 * 1024)


# ---------------------------------------------------------------------------
# single-buffered specs for grid-invariant weights (probe once, fall back)
# ---------------------------------------------------------------------------
def _probe_copy_kernel(x_ref, o_ref):
    o_ref[...] = x_ref[...]


_SINGLE_BUFFER_OK = None


def _single_buffer_ok():
    """Whether pipeline_mode=pl.Buffered(1) lowers & runs correctly here."""
    global _SINGLE_BUFFER_OK
    if _SINGLE_BUFFER_OK is None:
        try:
            out = pl.pallas_call(
                _probe_copy_kernel,
                out_shape=jax.ShapeDtypeStruct((16, 128), jnp.float32),
                grid=(2,),
                in_specs=[pl.BlockSpec((8, 128), lambda i: (0, 0),
                                       pipeline_mode=pl.Buffered(1))],
                out_specs=pl.BlockSpec((8, 128), lambda i: (i, 0)),
            )(jnp.ones((8, 128), jnp.float32))
            _SINGLE_BUFFER_OK = bool(jax.block_until_ready(jnp.all(out == 1.0)))
        except Exception:
            _SINGLE_BUFFER_OK = False
    return _SINGLE_BUFFER_OK


def _const_spec(shape, grid_rank):
    """BlockSpec for a grid-invariant (weight / bias) operand.

    Single-buffered when supported so reused weights don't cost 2x VMEM
    (matters most for v7x's 64 MiB VMEM with the larger row tiles)."""
    zeros = (0,) * len(shape)
    if grid_rank == 1:
        index_map = lambda i: zeros
    else:
        index_map = lambda i, j: zeros
    if _single_buffer_ok():
        return pl.BlockSpec(shape, index_map, pipeline_mode=pl.Buffered(1))
    return pl.BlockSpec(shape, index_map)


# ---------------------------------------------------------------------------
# Pallas kernels
# ---------------------------------------------------------------------------
def _conv1x1_kernel(x_ref, w_ref, b_ref, o_ref):
    # native NCHW 1x1 conv: (Cout,Cin) @ (Cin,THW) + b, spatial axis on lanes
    # x: (Cin, THW) f32 (cast to bf16 in-kernel), w: (Cout, Cin) bf16,
    # b: (Cout, 1) f32, o: (Cout, THW) bf16
    acc = jnp.dot(w_ref[...], x_ref[...].astype(jnp.bfloat16),
                  preferred_element_type=jnp.float32)
    o_ref[...] = (acc + b_ref[...]).astype(o_ref.dtype)


def _heads_kernel(x_ref, w1_ref, b1_ref, sw2_ref, sb2_ref, sw3_ref, sb3_ref,
                  ow2_ref, ob2_ref, ow3_ref, ob3_ref, o_ref, *, hd, direct_w):
    x = x_ref[...].astype(jnp.bfloat16)
    # one wide MXU-filling matmul: [obj_class | match | pad | sub_w1 | objb_w1]
    t1 = jnp.dot(x, w1_ref[...], preferred_element_type=jnp.float32) + b1_ref[...]
    # direct segment (obj logits + matching): lane-aligned 128-wide store,
    # taken straight from the matmul result (no concatenate / XLU packing).
    o_ref[:, 0:direct_w] = t1[:, 0:direct_w]

    h_sub = jnp.maximum(t1[:, direct_w:direct_w + hd], 0.0).astype(jnp.bfloat16)
    h_obj = jnp.maximum(t1[:, direct_w + hd:direct_w + 2 * hd],
                        0.0).astype(jnp.bfloat16)

    # sub bbox MLP layers 2,3 + sigmoid; layer-3 weight lane-padded to 128
    t2s = jnp.maximum(
        jnp.dot(h_sub, sw2_ref[...], preferred_element_type=jnp.float32)
        + sb2_ref[...], 0.0).astype(jnp.bfloat16)
    o_ref[:, direct_w:direct_w + 128] = jax.nn.sigmoid(
        jnp.dot(t2s, sw3_ref[...], preferred_element_type=jnp.float32)
        + sb3_ref[...])

    # obj bbox MLP layers 2,3 + sigmoid
    t2o = jnp.maximum(
        jnp.dot(h_obj, ow2_ref[...], preferred_element_type=jnp.float32)
        + ob2_ref[...], 0.0).astype(jnp.bfloat16)
    o_ref[:, direct_w + 128:direct_w + 256] = jax.nn.sigmoid(
        jnp.dot(t2o, ow3_ref[...], preferred_element_type=jnp.float32)
        + ob3_ref[...])


def _verb_kernel(x_ref, w_ref, b_ref, text_t_ref, o_ref):
    # verb_class_embed -> L2 normalize -> @ normalized_text.T -> * 10
    # Normalization applied as a row scale AFTER the (narrow) text matmul so
    # the wide (TM,768) f32 intermediate is consumed once (no vn copy).
    x = x_ref[...].astype(jnp.bfloat16)
    v = jnp.dot(x, w_ref[...], preferred_element_type=jnp.float32) + b_ref[...]
    inv_norm = jax.lax.rsqrt(jnp.sum(v * v, axis=-1, keepdims=True) + 1e-12)
    logits = jnp.dot(v.astype(jnp.bfloat16), text_t_ref[...],
                     preferred_element_type=jnp.float32)
    o_ref[...] = logits * (inv_norm * 10.0)


# ---------------------------------------------------------------------------
# Pallas wrappers
# ---------------------------------------------------------------------------
def conv1x1(x_nchw, w, b, *, hw_tile=512):
    """1x1 Conv2d in native NCHW layout (no wrapper-side transpose).

    x: (B, Cin, H, W) f32, w: (Cout, Cin), b: (Cout,)  ->  (B, Cout, H, W) bf16.
    """
    B, Cin, H, W = x_nchw.shape
    Cout = w.shape[0]
    HW = H * W
    thw = min(hw_tile, _round_up(HW, 128))
    hw_pad = _round_up(HW, thw)

    x3 = x_nchw.reshape(B, Cin, HW)                 # free reshape (contiguous)
    if hw_pad != HW:
        x3 = jnp.pad(x3, ((0, 0), (0, 0), (0, hw_pad - HW)))
    wt = w.astype(jnp.bfloat16)                     # (Cout, Cin)
    b2 = b.reshape(Cout, 1).astype(jnp.float32)

    out = pl.pallas_call(
        _conv1x1_kernel,
        out_shape=jax.ShapeDtypeStruct((B, Cout, hw_pad), jnp.bfloat16),
        grid=(B, hw_pad // thw),
        in_specs=[pl.BlockSpec((None, Cin, thw), lambda bi, j: (bi, 0, j)),
                  _const_spec((Cout, Cin), 2),
                  _const_spec((Cout, 1), 2)],
        out_specs=pl.BlockSpec((None, Cout, thw), lambda bi, j: (bi, 0, j)),
        compiler_params=_cparams("parallel", "parallel"),
    )(x3, wt, b2)

    if hw_pad != HW:
        out = out[:, :, :HW]
    return out.reshape(B, Cout, H, W)


_BOX_PAD = 128   # lane width of each bbox output segment


def run_heads(x2d, p, *, row_tile=256):
    """x2d: (N, hidden).  Returns obj_logits, sub_boxes, obj_boxes, matching."""
    N, hd = x2d.shape
    C1 = p["obj_class_w"].shape[1]        # num_obj_classes + 1
    n_direct = C1 + 2                     # obj logits + matching logits
    direct_w = _round_up(n_direct, 128)

    # fused stage-1 weight [obj_class | match | 0-pad->direct_w | sub_w1 | objb_w1 | 0-pad]
    w1 = jnp.concatenate([p["obj_class_w"], p["match_w"]], axis=1)
    w1 = jnp.pad(w1, ((0, 0), (0, direct_w - n_direct)))
    w1 = jnp.concatenate([w1, p["sub_w1"], p["objb_w1"]], axis=1)
    w1_cols = _round_up(w1.shape[1], 128)
    w1 = jnp.pad(w1, ((0, 0), (0, w1_cols - w1.shape[1]))).astype(jnp.bfloat16)

    b1 = jnp.concatenate([p["obj_class_b"], p["match_b"]], axis=1)
    b1 = jnp.pad(b1, ((0, 0), (0, direct_w - n_direct)))
    b1 = jnp.concatenate([b1, p["sub_b1"], p["objb_b1"]], axis=1)
    b1 = jnp.pad(b1, ((0, 0), (0, w1_cols - b1.shape[1])))

    # layer-3 bbox weights lane-padded to 128 output columns so the final
    # matmuls produce 128-lane dense segments directly.
    sw3 = jnp.pad(p["sub_w3"], ((0, 0), (0, _BOX_PAD - 4))).astype(jnp.bfloat16)
    sb3 = jnp.pad(p["sub_b3"], ((0, 0), (0, _BOX_PAD - 4)))
    ow3 = jnp.pad(p["objb_w3"], ((0, 0), (0, _BOX_PAD - 4))).astype(jnp.bfloat16)
    ob3 = jnp.pad(p["objb_b3"], ((0, 0), (0, _BOX_PAD - 4)))

    out_w = direct_w + 2 * _BOX_PAD
    tm = _row_tile(N, row_tile)
    n_pad = _round_up(N, tm)
    x = _pad_rows(x2d, n_pad)

    args = (x, w1, b1,
            p["sub_w2"].astype(jnp.bfloat16), p["sub_b2"], sw3, sb3,
            p["objb_w2"].astype(jnp.bfloat16), p["objb_b2"], ow3, ob3)
    in_specs = [pl.BlockSpec((tm, hd), lambda i: (i, 0))] + [
        _const_spec(a.shape, 1) for a in args[1:]]

    packed = pl.pallas_call(
        functools.partial(_heads_kernel, hd=hd, direct_w=direct_w),
        out_shape=jax.ShapeDtypeStruct((n_pad, out_w), jnp.float32),
        grid=(n_pad // tm,),
        in_specs=in_specs,
        out_specs=pl.BlockSpec((tm, out_w), lambda i: (i, 0)),
        compiler_params=_cparams("parallel"),
    )(*args)

    packed = packed[:N]
    obj_logits = packed[:, :C1]
    matching = packed[:, C1:C1 + 2]
    sub_boxes = packed[:, direct_w:direct_w + 4]
    obj_boxes = packed[:, direct_w + _BOX_PAD:direct_w + _BOX_PAD + 4]
    return obj_logits, sub_boxes, obj_boxes, matching


def run_verb(x2d, p, *, row_tile=512):
    """x2d: (N, hidden) -> verb logits (N, num_actions)."""
    N, hd = x2d.shape
    w = p["verb_w"].astype(jnp.bfloat16)      # (hidden, 768)
    b = p["verb_b"]                           # (1, 768) f32
    text = p["clip_action_semantics"]         # (num_actions, 768)
    num_actions = text.shape[0]

    # parameter preprocessing (plain JAX glue): normalize text features,
    # transpose and lane-pad the action axis so the output store is dense.
    text_n = text * jax.lax.rsqrt(
        jnp.sum(text * text, axis=-1, keepdims=True) + 1e-12)
    a_pad = _round_up(num_actions, 128)
    text_t = jnp.pad(jnp.transpose(text_n),
                     ((0, 0), (0, a_pad - num_actions))).astype(jnp.bfloat16)

    tm = _row_tile(N, row_tile)
    n_pad = _round_up(N, tm)
    x = _pad_rows(x2d, n_pad)

    out = pl.pallas_call(
        _verb_kernel,
        out_shape=jax.ShapeDtypeStruct((n_pad, a_pad), jnp.float32),
        grid=(n_pad // tm,),
        in_specs=[pl.BlockSpec((tm, hd), lambda i: (i, 0)),
                  _const_spec(w.shape, 1),
                  _const_spec(b.shape, 1),
                  _const_spec(text_t.shape, 1)],
        out_specs=pl.BlockSpec((tm, a_pad), lambda i: (i, 0)),
        compiler_params=_cparams("parallel"),
    )(x, w, b, text_t)
    return out[:N, :num_actions]


# ---------------------------------------------------------------------------
# Parameter init (deterministic, PyTorch-Linear-style uniform)
# ---------------------------------------------------------------------------
def _linear_init(key, fan_in, fan_out):
    kw, kb = jax.random.split(key)
    bound = 1.0 / jnp.sqrt(fan_in)
    w = jax.random.uniform(kw, (fan_in, fan_out), jnp.float32, -bound, bound)
    b = jax.random.uniform(kb, (1, fan_out), jnp.float32, -bound, bound)
    return w, b


def init_params(key, *, hidden, num_obj_classes, num_actions, backbone_channels,
                num_queries):
    ks = jax.random.split(key, 16)
    p = {}
    # input_proj: Conv2d(backbone_channels, hidden, 1)
    bound = 1.0 / jnp.sqrt(backbone_channels)
    p["proj_w"] = jax.random.uniform(ks[0], (hidden, backbone_channels),
                                     jnp.float32, -bound, bound)
    p["proj_b"] = jax.random.uniform(ks[1], (hidden,), jnp.float32, -bound, bound)
    # query embedding (consumed by the external transformer only)
    p["query_embed"] = jax.random.normal(ks[2], (num_queries, hidden), jnp.float32)
    p["obj_class_w"], p["obj_class_b"] = _linear_init(ks[3], hidden, num_obj_classes + 1)
    p["verb_w"], p["verb_b"] = _linear_init(ks[4], hidden, 768)
    p["sub_w1"], p["sub_b1"] = _linear_init(ks[5], hidden, hidden)
    p["sub_w2"], p["sub_b2"] = _linear_init(ks[6], hidden, hidden)
    p["sub_w3"], p["sub_b3"] = _linear_init(ks[7], hidden, 4)
    p["objb_w1"], p["objb_b1"] = _linear_init(ks[8], hidden, hidden)
    p["objb_w2"], p["objb_b2"] = _linear_init(ks[9], hidden, hidden)
    p["objb_w3"], p["objb_b3"] = _linear_init(ks[10], hidden, 4)
    p["match_w"], p["match_b"] = _linear_init(ks[11], hidden, 2)
    p["clip_action_semantics"] = jax.random.normal(
        ks[12], (num_actions, 768), jnp.float32)
    return p


# ---------------------------------------------------------------------------
# HOIModel forward (heads); backbone / transformer outputs are inputs
# ---------------------------------------------------------------------------
@functools.partial(jax.jit, static_argnames=("use_matching", "aux_loss"))
def hoi_forward(src, hopd_out, interaction_out, params,
                use_matching=True, aux_loss=False):
    """
    src:             (B, C_backbone, H, W)   - backbone feature map
    hopd_out:        (L1, B, Q, hidden)      - HOPD decoder outputs (all layers)
    interaction_out: (L2, B, Q, hidden)      - interaction decoder outputs
    """
    # 1x1 conv projection of backbone features (fed to the external
    # transformer in the original model; computed here to exercise the conv
    # kernel).  Native NCHW, bf16 output.
    projected_src = conv1x1(src, params["proj_w"], params["proj_b"])

    L1, B, Q, hd = hopd_out.shape
    L2 = interaction_out.shape[0]

    obj_logits, sub_boxes, obj_boxes, matching = run_heads(
        hopd_out.reshape(L1 * B * Q, hd), params)
    obj_logits = obj_logits.reshape(L1, B, Q, -1)
    sub_boxes = sub_boxes.reshape(L1, B, Q, 4)
    obj_boxes = obj_boxes.reshape(L1, B, Q, 4)
    matching = matching.reshape(L1, B, Q, 2)

    verb_logits = run_verb(
        interaction_out.reshape(L2 * B * Q, hd), params).reshape(L2, B, Q, -1)

    out = {
        "pred_obj_logits": obj_logits[-1],
        "pred_verb_logits": verb_logits[-1],
        "pred_sub_boxes": sub_boxes[-1],
        "pred_obj_boxes": obj_boxes[-1],
        "projected_src": projected_src,     # NCHW bf16 (extra, feeds transformer)
    }
    if use_matching:
        out["pred_matching_logits"] = matching[-1]
    if aux_loss:
        min_layers = min(L1, L2)
        aux = []
        for l in range(-min_layers, -1):
            d = {"pred_obj_logits": obj_logits[l],
                 "pred_verb_logits": verb_logits[l],
                 "pred_sub_boxes": sub_boxes[l],
                 "pred_obj_boxes": obj_boxes[l]}
            if use_matching:
                d["pred_matching_logits"] = matching[l]
            aux.append(d)
        out["aux_outputs"] = aux
    return out


# ---------------------------------------------------------------------------
# Main
# ---------------------------------------------------------------------------
if __name__ == "__main__":
    # small config
    B = 2
    backbone_channels = 4
    H = W = 16
    hidden = 32
    num_queries = 8
    num_obj_classes = 10          # -> 11 logits
    num_actions = 16
    dec_layers_hopd = 3
    dec_layers_interaction = 3

    key = jax.random.PRNGKey(0)
    kp, k1, k2, k3 = jax.random.split(key, 4)

    params = init_params(
        kp, hidden=hidden, num_obj_classes=num_obj_classes,
        num_actions=num_actions, backbone_channels=backbone_channels,
        num_queries=num_queries)

    # synthetic backbone / transformer outputs (deterministic)
    src = jax.random.normal(k1, (B, backbone_channels, H, W), jnp.float32)
    hopd_out = jax.random.normal(
        k2, (dec_layers_hopd, B, num_queries, hidden), jnp.float32)
    interaction_out = jax.random.normal(
        k3, (dec_layers_interaction, B, num_queries, hidden), jnp.float32)

    # prime the single-buffer probe before tracing the jitted forward
    _single_buffer_ok()

    out = hoi_forward(src, hopd_out, interaction_out, params)
    out = jax.block_until_ready(out)

    # sanity shape checks
    assert out["pred_obj_logits"].shape == (B, num_queries, num_obj_classes + 1)
    assert out["pred_verb_logits"].shape == (B, num_queries, num_actions)
    assert out["pred_sub_boxes"].shape == (B, num_queries, 4)
    assert out["pred_obj_boxes"].shape == (B, num_queries, 4)
    assert out["pred_matching_logits"].shape == (B, num_queries, 2)
    assert out["projected_src"].shape == (B, hidden, H, W)   # NCHW, bf16

    print("KERNEL_OK")
</pallas_src>

<mosaic_0001>
module attributes {stable_mosaic.version = 11 : i64} {
  func.func @_probe_copy_kernel(%arg0: i32, %arg1: memref<8x128xf32, #tpu.memory_space<vmem>>, %arg2: memref<8x128xf32, #tpu.memory_space<vmem>>) attributes {dimension_semantics = [#tpu.dimension_semantics<arbitrary>], iteration_bounds = array<i64: 2>, scalar_prefetch = 0 : i64, scratch_operands = 0 : i64, tpu.core_type = #tpu.core_type<tc>, window_params = [{pipeline_mode = #tpu.pipeline_mode<synchronous>, transform_indices = @transform_0, window_bounds = array<i64: 8, 128>}, {transform_indices = @transform_1, window_bounds = array<i64: 8, 128>}]} {
    %c0 = arith.constant 0 : index
    %c0_0 = arith.constant 0 : index
    %0 = vector.load %arg1[%c0, %c0_0] : memref<8x128xf32, #tpu.memory_space<vmem>>, vector<8x128xf32>
    %c0_1 = arith.constant 0 : index
    %c0_2 = arith.constant 0 : index
    %1 = vector.load %arg2[%c0_1, %c0_2] : memref<8x128xf32, #tpu.memory_space<vmem>>, vector<8x128xf32>
    tpu.vector_store %arg2[%c0_1, %c0_2], %0 {strides = array<i32>} : memref<8x128xf32, #tpu.memory_space<vmem>>, vector<8x128xf32>,
    return
  }
  func.func @transform_0(%arg0: i32) -> (i32, i32) {
    %c0_i32 = arith.constant 0 : i32
    %c0_i32_0 = arith.constant 0 : i32
    %c0_i32_1 = arith.constant 0 : i32
    return %c0_i32, %c0_i32_0 : i32, i32
  }
  func.func @transform_1(%arg0: i32) -> (i32, i32) {
    %c0_i32 = arith.constant 0 : i32
    %c0_i32_0 = arith.constant 0 : i32
    return %arg0, %c0_i32 : i32, i32
  }
}

module attributes {stable_mosaic.version = 11 : i64} {
  func.func @_heads_kernel(%arg0: i32, %arg1: memref<24x32xf32, #tpu.memory_space<vmem>>, %arg2: memref<32x256xbf16, #tpu.memory_space<vmem>>, %arg3: memref<1x256xf32, #tpu.memory_space<vmem>>, %arg4: memref<32x32xbf16, #tpu.memory_space<vmem>>, %arg5: memref<1x32xf32, #tpu.memory_space<vmem>>, %arg6: memref<32x128xbf16, #tpu.memory_space<vmem>>, %arg7: memref<1x128xf32, #tpu.memory_space<vmem>>, %arg8: memref<32x32xbf16, #tpu.memory_space<vmem>>, %arg9: memref<1x32xf32, #tpu.memory_space<vmem>>, %arg10: memref<32x128xbf16, #tpu.memory_space<vmem>>, %arg11: memref<1x128xf32, #tpu.memory_space<vmem>>, %arg12: memref<24x384xf32, #tpu.memory_space<vmem>>) attributes {dimension_semantics = [#tpu.dimension_semantics<parallel>], iteration_bounds = array<i64: 2>, scalar_prefetch = 0 : i64, scratch_operands = 0 : i64, tpu.core_type = #tpu.core_type<tc>, window_params = [{transform_indices = @transform_0, window_bounds = array<i64: 24, 32>}, {pipeline_mode = #tpu.pipeline_mode<synchronous>, transform_indices = @transform_1, window_bounds = array<i64: 32, 256>}, {pipeline_mode = #tpu.pipeline_mode<synchronous>, transform_indices = @transform_2, window_bounds = array<i64: 1, 256>}, {pipeline_mode = #tpu.pipeline_mode<synchronous>, transform_indices = @transform_3, window_bounds = array<i64: 32, 32>}, {pipeline_mode = #tpu.pipeline_mode<synchronous>, transform_indices = @transform_4, window_bounds = array<i64: 1, 32>}, {pipeline_mode = #tpu.pipeline_mode<synchronous>, transform_indices = @transform_5, window_bounds = array<i64: 32, 128>}, {pipeline_mode = #tpu.pipeline_mode<synchronous>, transform_indices = @transform_6, window_bounds = array<i64: 1, 128>}, {pipeline_mode = #tpu.pipeline_mode<synchronous>, transform_indices = @transform_7, window_bounds = array<i64: 32, 32>}, {pipeline_mode = #tpu.pipeline_mode<synchronous>, transform_indices = @transform_8, window_bounds = array<i64: 1, 32>}, {pipeline_mode = #tpu.pipeline_mode<synchronous>, transform_indices = @transform_9, window_bounds = array<i64: 32, 128>}, {pipeline_mode = #tpu.pipeline_mode<synchronous>, transform_indices = @transform_10, window_bounds = array<i64: 1, 128>}, {transform_indices = @transform_11, window_bounds = array<i64: 24, 384>}]} {
    %c0 = arith.constant 0 : index
    %c0_0 = arith.constant 0 : index
    %0 = vector.load %arg1[%c0, %c0_0] : memref<24x32xf32, #tpu.memory_space<vmem>>, vector<24x32xf32>
    %1 = arith.truncf %0 : vector<24x32xf32> to vector<24x32xbf16>
    %c0_1 = arith.constant 0 : index
    %c0_2 = arith.constant 0 : index
    %2 = vector.load %arg2[%c0_1, %c0_2] : memref<32x256xbf16, #tpu.memory_space<vmem>>, vector<32x256xbf16>
    %cst = arith.constant dense<0.000000e+00> : vector<24x256xf32>
    %3 = tpu.matmul %1, %2, %cst {dimension_numbers = #tpu.dot_dimension_numbers<[1], [0], [0], [1], [0, 0, 1, 1], [], []>} : vector<24x32xbf16>, vector<32x256xbf16>, vector<24x256xf32> -> vector<24x256xf32>
    %c0_3 = arith.constant 0 : index
    %c0_4 = arith.constant 0 : index
    %4 = vector.load %arg3[%c0_3, %c0_4] : memref<1x256xf32, #tpu.memory_space<vmem>>, vector<1x256xf32>
    %5 = vector.broadcast %4 : vector<1x256xf32> to vector<24x256xf32>
    %6 = arith.addf %3, %5 : vector<24x256xf32>
    %7 = vector.extract_strided_slice %6 {offsets = [0, 0], sizes = [24, 128], strides = [1, 1]} : vector<24x256xf32> to vector<24x128xf32>
    %c0_5 = arith.constant 0 : index
    %c0_6 = arith.constant 0 : index
    %8 = vector.load %arg12[%c0_5, %c0_6] : memref<24x384xf32, #tpu.memory_space<vmem>>, vector<24x128xf32>
    tpu.vector_store %arg12[%c0_5, %c0_6], %7 {strides = array<i32>} : memref<24x384xf32, #tpu.memory_space<vmem>>, vector<24x128xf32>,
    %9 = vector.extract_strided_slice %6 {offsets = [0, 128], sizes = [24, 32], strides = [1, 1]} : vector<24x256xf32> to vector<24x32xf32>
    %cst_7 = arith.constant 0.000000e+00 : f32
    %10 = vector.broadcast %cst_7 : f32 to vector<24x32xf32>
    %11 = arith.maximumf %9, %10 : vector<24x32xf32>
    %12 = arith.truncf %11 : vector<24x32xf32> to vector<24x32xbf16>
    %13 = vector.extract_strided_slice %6 {offsets = [0, 160], sizes = [24, 32], strides = [1, 1]} : vector<24x256xf32> to vector<24x32xf32>
    %cst_8 = arith.constant 0.000000e+00 : f32
    %14 = vector.broadcast %cst_8 : f32 to vector<24x32xf32>
    %15 = arith.maximumf %13, %14 : vector<24x32xf32>
    %16 = arith.truncf %15 : vector<24x32xf32> to vector<24x32xbf16>
    %c0_9 = arith.constant 0 : index
    %c0_10 = arith.constant 0 : index
    %17 = vector.load %arg4[%c0_9, %c0_10] : memref<32x32xbf16, #tpu.memory_space<vmem>>, vector<32x32xbf16>
    %cst_11 = arith.constant dense<0.000000e+00> : vector<24x32xf32>
    %18 = tpu.matmul %12, %17, %cst_11 {dimension_numbers = #tpu.dot_dimension_numbers<[1], [0], [0], [1], [0, 0, 1, 1], [], []>} : vector<24x32xbf16>, vector<32x32xbf16>, vector<24x32xf32> -> vector<24x32xf32>
    %c0_12 = arith.constant 0 : index
    %c0_13 = arith.constant 0 : index
    %19 = vector.load %arg5[%c0_12, %c0_13] : memref<1x32xf32, #tpu.memory_space<vmem>>, vector<1x32xf32>
    %20 = vector.broadcast %19 : vector<1x32xf32> to vector<24x32xf32>
    %21 = arith.addf %18, %20 : vector<24x32xf32>
    %cst_14 = arith.constant 0.000000e+00 : f32
    %22 = vector.broadcast %cst_14 : f32 to vector<24x32xf32>
    %23 = arith.maximumf %21, %22 : vector<24x32xf32>
    %24 = arith.truncf %23 : vector<24x32xf32> to vector<24x32xbf16>
    %c0_15 = arith.constant 0 : index
    %c0_16 = arith.constant 0 : index
    %25 = vector.load %arg6[%c0_15, %c0_16] : memref<32x128xbf16, #tpu.memory_space<vmem>>, vector<32x128xbf16>
    %cst_17 = arith.constant dense<0.000000e+00> : vector<24x128xf32>
    %26 = tpu.matmul %24, %25, %cst_17 {dimension_numbers = #tpu.dot_dimension_numbers<[1], [0], [0], [1], [0, 0, 1, 1], [], []>} : vector<24x32xbf16>, vector<32x128xbf16>, vector<24x128xf32> -> vector<24x128xf32>
    %c0_18 = arith.constant 0 : index
    %c0_19 = arith.constant 0 : index
    %27 = vector.load %arg7[%c0_18, %c0_19] : memref<1x128xf32, #tpu.memory_space<vmem>>, vector<1x128xf32>
    %28 = vector.broadcast %27 : vector<1x128xf32> to vector<24x128xf32>
    %29 = arith.addf %26, %28 : vector<24x128xf32>
    %30 = arith.negf %29 : vector<24x128xf32>
    %31 = math.exp %30 : vector<24x128xf32>
    %cst_20 = arith.constant 1.000000e+00 : f32
    %32 = vector.broadcast %cst_20 : f32 to vector<24x128xf32>
    %33 = arith.addf %32, %31 : vector<24x128xf32>
    %34 = arith.divf %32, %33 : vector<24x128xf32>
    %c0_21 = arith.constant 0 : index
    %c128 = arith.constant 128 : index
    %35 = vector.load %arg12[%c0_21, %c128] : memref<24x384xf32, #tpu.memory_space<vmem>>, vector<24x128xf32>
    tpu.vector_store %arg12[%c0_21, %c128], %34 {strides = array<i32>} : memref<24x384xf32, #tpu.memory_space<vmem>>, vector<24x128xf32>,
    %c0_22 = arith.constant 0 : index
    %c0_23 = arith.constant 0 : index
    %36 = vector.load %arg8[%c0_22, %c0_23] : memref<32x32xbf16, #tpu.memory_space<vmem>>, vector<32x32xbf16>
    %cst_24 = arith.constant dense<0.000000e+00> : vector<24x32xf32>
    %37 = tpu.matmul %16, %36, %cst_24 {dimension_numbers = #tpu.dot_dimension_numbers<[1], [0], [0], [1], [0, 0, 1, 1], [], []>} : vector<24x32xbf16>, vector<32x32xbf16>, vector<24x32xf32> -> vector<24x32xf32>
    %c0_25 = arith.constant 0 : index
    %c0_26 = arith.constant 0 : index
    %38 = vector.load %arg9[%c0_25, %c0_26] : memref<1x32xf32, #tpu.memory_space<vmem>>, vector<1x32xf32>
    %39 = vector.broadcast %38 : vector<1x32xf32> to vector<24x32xf32>
    %40 = arith.addf %37, %39 : vector<24x32xf32>
    %cst_27 = arith.constant 0.000000e+00 : f32
    %41 = vector.broadcast %cst_27 : f32 to vector<24x32xf32>
    %42 = arith.maximumf %40, %41 : vector<24x32xf32>
    %43 = arith.truncf %42 : vector<24x32xf32> to vector<24x32xbf16>
    %c0_28 = arith.constant 0 : index
    %c0_29 = arith.constant 0 : index
    %44 = vector.load %arg10[%c0_28, %c0_29] : memref<32x128xbf16, #tpu.memory_space<vmem>>, vector<32x128xbf16>
    %cst_30 = arith.constant dense<0.000000e+00> : vector<24x128xf32>
    %45 = tpu.matmul %43, %44, %cst_30 {dimension_numbers = #tpu.dot_dimension_numbers<[1], [0], [0], [1], [0, 0, 1, 1], [], []>} : vector<24x32xbf16>, vector<32x128xbf16>, vector<24x128xf32> -> vector<24x128xf32>
    %c0_31 = arith.constant 0 : index
    %c0_32 = arith.constant 0 : index
    %46 = vector.load %arg11[%c0_31, %c0_32] : memref<1x128xf32, #tpu.memory_space<vmem>>, vector<1x128xf32>
    %47 = vector.broadcast %46 : vector<1x128xf32> to vector<24x128xf32>
    %48 = arith.addf %45, %47 : vector<24x128xf32>
    %49 = arith.negf %48 : vector<24x128xf32>
    %50 = math.exp %49 : vector<24x128xf32>
    %cst_33 = arith.constant 1.000000e+00 : f32
    %51 = vector.broadcast %cst_33 : f32 to vector<24x128xf32>
    %52 = arith.addf %51, %50 : vector<24x128xf32>
    %53 = arith.divf %51, %52 : vector<24x128xf32>
    %c0_34 = arith.constant 0 : index
    %c256 = arith.constant 256 : index
    %54 = vector.load %arg12[%c0_34, %c256] : memref<24x384xf32, #tpu.memory_space<vmem>>, vector<24x128xf32>
    tpu.vector_store %arg12[%c0_34, %c256], %53 {strides = array<i32>} : memref<24x384xf32, #tpu.memory_space<vmem>>, vector<24x128xf32>,
    return
  }
  func.func @transform_0(%arg0: i32) -> (i32, i32) {
    %c0_i32 = arith.constant 0 : i32
    %c0_i32_0 = arith.constant 0 : i32
    return %arg0, %c0_i32 : i32, i32
  }
  func.func @transform_1(%arg0: i32) -> (i32, i32) {
    %c0_i32 = arith.constant 0 : i32
    %c0_i32_0 = arith.constant 0 : i32
    %c0_i32_1 = arith.constant 0 : i32
    return %c0_i32, %c0_i32_0 : i32, i32
  }
  func.func @transform_2(%arg0: i32) -> (i32, i32) {
    %c0_i32 = arith.constant 0 : i32
    %c0_i32_0 = arith.constant 0 : i32
    %c0_i32_1 = arith.constant 0 : i32
    return %c0_i32, %c0_i32_0 : i32, i32
  }
  func.func @transform_3(%arg0: i32) -> (i32, i32) {
    %c0_i32 = arith.constant 0 : i32
    %c0_i32_0 = arith.constant 0 : i32
    %c0_i32_1 = arith.constant 0 : i32
    return %c0_i32, %c0_i32_0 : i32, i32
  }
  func.func @transform_4(%arg0: i32) -> (i32, i32) {
    %c0_i32 = arith.constant 0 : i32
    %c0_i32_0 = arith.constant 0 : i32
    %c0_i32_1 = arith.constant 0 : i32
    return %c0_i32, %c0_i32_0 : i32, i32
  }
  func.func @transform_5(%arg0: i32) -> (i32, i32) {
    %c0_i32 = arith.constant 0 : i32
    %c0_i32_0 = arith.constant 0 : i32
    %c0_i32_1 = arith.constant 0 : i32
    return %c0_i32, %c0_i32_0 : i32, i32
  }
  func.func @transform_6(%arg0: i32) -> (i32, i32) {
    %c0_i32 = arith.constant 0 : i32
    %c0_i32_0 = arith.constant 0 : i32
    %c0_i32_1 = arith.constant 0 : i32
    return %c0_i32, %c0_i32_0 : i32, i32
  }
  func.func @transform_7(%arg0: i32) -> (i32, i32) {
    %c0_i32 = arith.constant 0 : i32
    %c0_i32_0 = arith.constant 0 : i32
    %c0_i32_1 = arith.constant 0 : i32
    return %c0_i32, %c0_i32_0 : i32, i32
  }
  func.func @transform_8(%arg0: i32) -> (i32, i32) {
    %c0_i32 = arith.constant 0 : i32
    %c0_i32_0 = arith.constant 0 : i32
    %c0_i32_1 = arith.constant 0 : i32
    return %c0_i32, %c0_i32_0 : i32, i32
  }
  func.func @transform_9(%arg0: i32) -> (i32, i32) {
    %c0_i32 = arith.constant 0 : i32
    %c0_i32_0 = arith.constant 0 : i32
    %c0_i32_1 = arith.constant 0 : i32
    return %c0_i32, %c0_i32_0 : i32, i32
  }
  func.func @transform_10(%arg0: i32) -> (i32, i32) {
    %c0_i32 = arith.constant 0 : i32
    %c0_i32_0 = arith.constant 0 : i32
    %c0_i32_1 = arith.constant 0 : i32
    return %c0_i32, %c0_i32_0 : i32, i32
  }
  func.func @transform_11(%arg0: i32) -> (i32, i32) {
    %c0_i32 = arith.constant 0 : i32
    %c0_i32_0 = arith.constant 0 : i32
    return %arg0, %c0_i32 : i32, i32
  }
}

module attributes {stable_mosaic.version = 11 : i64} {
  func.func @_verb_kernel(%arg0: i32, %arg1: memref<24x32xf32, #tpu.memory_space<vmem>>, %arg2: memref<32x768xbf16, #tpu.memory_space<vmem>>, %arg3: memref<1x768xf32, #tpu.memory_space<vmem>>, %arg4: memref<768x128xbf16, #tpu.memory_space<vmem>>, %arg5: memref<24x128xf32, #tpu.memory_space<vmem>>) attributes {dimension_semantics = [#tpu.dimension_semantics<parallel>], iteration_bounds = array<i64: 2>, scalar_prefetch = 0 : i64, scratch_operands = 0 : i64, tpu.core_type = #tpu.core_type<tc>, window_params = [{transform_indices = @transform_0, window_bounds = array<i64: 24, 32>}, {pipeline_mode = #tpu.pipeline_mode<synchronous>, transform_indices = @transform_1, window_bounds = array<i64: 32, 768>}, {pipeline_mode = #tpu.pipeline_mode<synchronous>, transform_indices = @transform_2, window_bounds = array<i64: 1, 768>}, {pipeline_mode = #tpu.pipeline_mode<synchronous>, transform_indices = @transform_3, window_bounds = array<i64: 768, 128>}, {transform_indices = @transform_4, window_bounds = array<i64: 24, 128>}]} {
    %c0 = arith.constant 0 : index
    %c0_0 = arith.constant 0 : index
    %0 = vector.load %arg1[%c0, %c0_0] : memref<24x32xf32, #tpu.memory_space<vmem>>, vector<24x32xf32>
    %1 = arith.truncf %0 : vector<24x32xf32> to vector<24x32xbf16>
    %c0_1 = arith.constant 0 : index
    %c0_2 = arith.constant 0 : index
    %2 = vector.load %arg2[%c0_1, %c0_2] : memref<32x768xbf16, #tpu.memory_space<vmem>>, vector<32x768xbf16>
    %cst = arith.constant dense<0.000000e+00> : vector<24x768xf32>
    %3 = tpu.matmul %1, %2, %cst {dimension_numbers = #tpu.dot_dimension_numbers<[1], [0], [0], [1], [0, 0, 1, 1], [], []>} : vector<24x32xbf16>, vector<32x768xbf16>, vector<24x768xf32> -> vector<24x768xf32>
    %c0_3 = arith.constant 0 : index
    %c0_4 = arith.constant 0 : index
    %4 = vector.load %arg3[%c0_3, %c0_4] : memref<1x768xf32, #tpu.memory_space<vmem>>, vector<1x768xf32>
    %5 = vector.broadcast %4 : vector<1x768xf32> to vector<24x768xf32>
    %6 = arith.addf %3, %5 : vector<24x768xf32>
    %7 = arith.mulf %6, %6 : vector<24x768xf32>
    %cst_5 = arith.constant dense<0.000000e+00> : vector<24xf32>
    %8 = vector.multi_reduction <add>, %7, %cst_5 [1] : vector<24x768xf32> to vector<24xf32>
    %9 = vector.shape_cast %8 : vector<24xf32> to vector<24x1xf32>
    %cst_6 = arith.constant 9.99999996E-13 : f32
    %10 = vector.broadcast %cst_6 : f32 to vector<24x1xf32>
    %11 = arith.addf %9, %10 : vector<24x1xf32>
    %12 = math.rsqrt %11 : vector<24x1xf32>
    %13 = arith.truncf %6 : vector<24x768xf32> to vector<24x768xbf16>
    %c0_7 = arith.constant 0 : index
    %c0_8 = arith.constant 0 : index
    %14 = vector.load %arg4[%c0_7, %c0_8] : memref<768x128xbf16, #tpu.memory_space<vmem>>, vector<768x128xbf16>
    %cst_9 = arith.constant dense<0.000000e+00> : vector<24x128xf32>
    %15 = tpu.matmul %13, %14, %cst_9 {dimension_numbers = #tpu.dot_dimension_numbers<[1], [0], [0], [1], [0, 0, 1, 1], [], []>} : vector<24x768xbf16>, vector<768x128xbf16>, vector<24x128xf32> -> vector<24x128xf32>
    %cst_10 = arith.constant 1.000000e+01 : f32
    %16 = vector.broadcast %cst_10 : f32 to vector<24x1xf32>
    %17 = arith.mulf %12, %16 : vector<24x1xf32>
    %18 = vector.broadcast %17 : vector<24x1xf32> to vector<24x128xf32>
    %19 = arith.mulf %15, %18 : vector<24x128xf32>
    %c0_11 = arith.constant 0 : index
    %c0_12 = arith.constant 0 : index
    %20 = vector.load %arg5[%c0_11, %c0_12] : memref<24x128xf32, #tpu.memory_space<vmem>>, vector<24x128xf32>
    tpu.vector_store %arg5[%c0_11, %c0_12], %19 {strides = array<i32>} : memref<24x128xf32, #tpu.memory_space<vmem>>, vector<24x128xf32>,
    return
  }
  func.func @transform_0(%arg0: i32) -> (i32, i32) {
    %c0_i32 = arith.constant 0 : i32
    %c0_i32_0 = arith.constant 0 : i32
    return %arg0, %c0_i32 : i32, i32
  }
  func.func @transform_1(%arg0: i32) -> (i32, i32) {
    %c0_i32 = arith.constant 0 : i32
    %c0_i32_0 = arith.constant 0 : i32
    %c0_i32_1 = arith.constant 0 : i32
    return %c0_i32, %c0_i32_0 : i32, i32
  }
  func.func @transform_2(%arg0: i32) -> (i32, i32) {
    %c0_i32 = arith.constant 0 : i32
    %c0_i32_0 = arith.constant 0 : i32
    %c0_i32_1 = arith.constant 0 : i32
    return %c0_i32, %c0_i32_0 : i32, i32
  }
  func.func @transform_3(%arg0: i32) -> (i32, i32) {
    %c0_i32 = arith.constant 0 : i32
    %c0_i32_0 = arith.constant 0 : i32
    %c0_i32_1 = arith.constant 0 : i32
    return %c0_i32, %c0_i32_0 : i32, i32
  }
  func.func @transform_4(%arg0: i32) -> (i32, i32) {
    %c0_i32 = arith.constant 0 : i32
    %c0_i32_0 = arith.constant 0 : i32
    return %arg0, %c0_i32 : i32, i32
  }
}

module attributes {stable_mosaic.version = 11 : i64} {
  func.func @_conv1x1_kernel(%arg0: i32, %arg1: i32, %arg2: memref<1x4x256xf32, #tpu.memory_space<vmem>>, %arg3: memref<32x4xbf16, #tpu.memory_space<vmem>>, %arg4: memref<32x1xf32, #tpu.memory_space<vmem>>, %arg5: memref<1x32x256xbf16, #tpu.memory_space<vmem>>) attributes {dimension_semantics = [#tpu.dimension_semantics<parallel>, #tpu.dimension_semantics<parallel>], iteration_bounds = array<i64: 2, 1>, scalar_prefetch = 0 : i64, scratch_operands = 0 : i64, tpu.core_type = #tpu.core_type<tc>, window_params = [{transform_indices = @transform_0, window_bounds = array<i64: 1, 4, 256>}, {pipeline_mode = #tpu.pipeline_mode<synchronous>, transform_indices = @transform_1, window_bounds = array<i64: 32, 4>}, {pipeline_mode = #tpu.pipeline_mode<synchronous>, transform_indices = @transform_2, window_bounds = array<i64: 32, 1>}, {transform_indices = @transform_3, window_bounds = array<i64: 1, 32, 256>}]} {
    %c0 = arith.constant 0 : index
    %c0_0 = arith.constant 0 : index
    %0 = vector.load %arg3[%c0, %c0_0] : memref<32x4xbf16, #tpu.memory_space<vmem>>, vector<32x4xbf16>
    %c0_1 = arith.constant 0 : index
    %c0_2 = arith.constant 0 : index
    %c0_3 = arith.constant 0 : index
    %1 = vector.load %arg2[%c0_1, %c0_2, %c0_3] : memref<1x4x256xf32, #tpu.memory_space<vmem>>, vector<1x4x256xf32>
    %2 = vector.shape_cast %1 : vector<1x4x256xf32> to vector<4x256xf32>
    %3 = arith.truncf %2 : vector<4x256xf32> to vector<4x256xbf16>
    %cst = arith.constant dense<0.000000e+00> : vector<32x256xf32>
    %4 = tpu.matmul %0, %3, %cst {dimension_numbers = #tpu.dot_dimension_numbers<[1], [0], [0], [1], [0, 0, 1, 1], [], []>} : vector<32x4xbf16>, vector<4x256xbf16>, vector<32x256xf32> -> vector<32x256xf32>
    %c0_4 = arith.constant 0 : index
    %c0_5 = arith.constant 0 : index
    %5 = vector.load %arg4[%c0_4, %c0_5] : memref<32x1xf32, #tpu.memory_space<vmem>>, vector<32x1xf32>
    %6 = vector.broadcast %5 : vector<32x1xf32> to vector<32x256xf32>
    %7 = arith.addf %4, %6 : vector<32x256xf32>
    %8 = arith.truncf %7 : vector<32x256xf32> to vector<32x256xbf16>
    %c0_6 = arith.constant 0 : index
    %c0_7 = arith.constant 0 : index
    %c0_8 = arith.constant 0 : index
    %9 = vector.load %arg5[%c0_6, %c0_7, %c0_8] : memref<1x32x256xbf16, #tpu.memory_space<vmem>>, vector<1x32x256xbf16>
    %10 = vector.shape_cast %9 : vector<1x32x256xbf16> to vector<32x256xbf16>
    %11 = vector.shape_cast %8 : vector<32x256xbf16> to vector<1x32x256xbf16>
    tpu.vector_store %arg5[%c0_6, %c0_7, %c0_8], %11 {strides = array<i32>} : memref<1x32x256xbf16, #tpu.memory_space<vmem>>, vector<1x32x256xbf16>,
    return
  }
  func.func @transform_0(%arg0: i32, %arg1: i32) -> (i32, i32, i32) {
    %c0_i32 = arith.constant 0 : i32
    %c0_i32_0 = arith.constant 0 : i32
    return %arg0, %c0_i32, %arg1 : i32, i32, i32
  }
  func.func @transform_1(%arg0: i32, %arg1: i32) -> (i32, i32) {
    %c0_i32 = arith.constant 0 : i32
    %c0_i32_0 = arith.constant 0 : i32
    %c0_i32_1 = arith.constant 0 : i32
    return %c0_i32, %c0_i32_0 : i32, i32
  }
  func.func @transform_2(%arg0: i32, %arg1: i32) -> (i32, i32) {
    %c0_i32 = arith.constant 0 : i32
    %c0_i32_0 = arith.constant 0 : i32
    %c0_i32_1 = arith.constant 0 : i32
    return %c0_i32, %c0_i32_0 : i32, i32
  }
  func.func @transform_3(%arg0: i32, %arg1: i32) -> (i32, i32, i32) {
    %c0_i32 = arith.constant 0 : i32
    %c0_i32_0 = arith.constant 0 : i32
    return %arg0, %c0_i32, %arg1 : i32, i32, i32
  }
}

</mosaic_0001>

<llo_original>
// kernel: tpu_custom_call.1
$region0: #{tpu_custom_call.1}
  #allocation0 [shape = 'u32[]', space=smem, size = 0x4, offset = 0x4, fixed_abs, tag = 'smem constant byte address 0x4 - core index']
  #allocation1 [shape = 'u32[144,128]{1,0:T(1,128)}', space=vmem, size = 0x12000, scoped, tag = 'internal scratch']
  %s0 = inlined_call_operand.hbm [shape: f32[8,128], index: 0, kind: input, shape index: {}]
  %s1 = inlined_call_operand.hbm [shape: f32[16,128], index: 1, kind: output, shape index: {}]
  %s2 = sld [smem:[#allocation0]]
  $region41: #{tpu_custom_call.1} parent=0
    _
  %s4 = ssub.s32 1, %s2
  %s5 = scalar_select 0, %s4, %s2
  $region1: #{tpu_custom_call.1} parent=0
    #allocation2 [shape = 'u8[4096]{0}', space=vmem, size = 0x1000, scoped, tag = 'input window, operand 0, single buffered']
    #allocation3 [shape = 's32[2]{0}', space=sflag, size = 0x8, scoped, tag = 'scoped memory for tpu_custom_call.1']
    #allocation4 [shape = 's32[2]{0}', space=sflag, size = 0x8, scoped, tag = 'scoped memory for tpu_custom_call.1']
    #allocation5 [shape = 'u8[8192]{0}', space=vmem, size = 0x2000, scoped, tag = 'output window, operand 0']
    %6 = vsyncpa [#allocation3], 0
    %7 = vsyncpa [#allocation4], 0
    %s8 = scalar_lea.sflag [#allocation4], 1
    %9 = vsyncpa %s8, 0
    loop: start=0, step=1, limit=4
    $region2: #{tpu_custom_call.1} parent=1 // loop_pre_header
      _
    $region3: #{tpu_custom_call.1} parent=1 // loop_header
      %s11 = sphi 0, %s15
      %p12 = scmp.ge.s32.totalorder %s11, 4
      %s19 = sphi 0, %s19
      %s21 = sphi 0, %s19
      %s22 = sphi 0, %s21
      %s36 = sphi 0, %s22
      %s42 = sphi 0, %s44
      %s45 = sphi 0, %s42
      %s46 = sphi 0, %s45
      %s62 = sphi 0, %s46
    $region4: #{tpu_custom_call.1} parent=1 // loop_header_branch
      %14 = sbr.rel (%p12) target = $region8
    $region5: #{tpu_custom_call.1} parent=1 // loop_body
      %s16 = ssub.s32 %s11, 1
      %s17 = ssub.s32 %s11, 2
      %s18 = sadd.s32 %s11, 1
      %s20 = sadd.s32 %s19, 1
      %p23 = scmp.eq.s32.totalorder %s11, 1
      %p24 = scmp.ne.s32.totalorder %s19, %s21
      %p25 = scmp.eq.s32.totalorder %s11, 0
      %p26 = por %p24, %p25
      %p27 = scmp.ne.s32.totalorder %s19, %s21
      %p28 = scmp.eq.s32.totalorder %s16, 1
      %p29 = por %p27, %p28
      %p30 = scmp.ne.s32.totalorder %s21, %s22
      %p31 = scmp.eq.s32.totalorder %s16, 0
      %p32 = por %p30, %p31
      %p33 = scmp.ne.s32.totalorder %s21, %s22
      %p34 = scmp.eq.s32.totalorder %s17, 1
      %p35 = por %p33, %p34
      %p37 = scmp.ne.s32.totalorder %s22, %s36
      %p38 = scmp.eq.s32.totalorder %s17, 0
      %p39 = por %p37, %p38
      %s40 = ssub.s32 %s11, %s18
      %p41 = scmp.eq.s32.totalorder %s40, 0
      %s43 = sadd.s32 %s42, 1
      %s44 = scalar_select %p41, %s42, %s43
      %p47 = pneg %p41
      %p48 = scmp.eq.s32.totalorder %s11, 1
      %p49 = por %p47, %p48
      %p50 = scmp.ne.s32.totalorder %s42, %s45
      %p51 = scmp.eq.s32.totalorder %s11, 0
      %p52 = por %p50, %p51
      %p53 = scmp.ne.s32.totalorder %s42, %s45
      %p54 = scmp.eq.s32.totalorder %s16, 1
      %p55 = por %p53, %p54
      %p56 = scmp.ne.s32.totalorder %s45, %s46
      %p57 = scmp.eq.s32.totalorder %s16, 0
      %p58 = por %p56, %p57
      %p59 = scmp.ne.s32.totalorder %s45, %s46
      %p60 = scmp.eq.s32.totalorder %s17, 1
      %p61 = por %p59, %p60
      %p63 = scmp.ne.s32.totalorder %s46, %s62
      %p64 = scmp.eq.s32.totalorder %s17, 0
      %p65 = por %p63, %p64
      %p66 = scmp.le.s32.totalorder 1, %s11
      %p67 = scmp.lt.s32.totalorder %s11, 3
      %p68 = pnand %p66, %p67
      %p69 = pneg %p68
      // Predicated region
      $region9: #{tpu_custom_call.1} parent=5 // pred_check
        _
      $region10: #{tpu_custom_call.1} parent=5 // pred_check_branch
        %71 = sbr.rel (%p68) target = $region12
      $region11: #{tpu_custom_call.1} parent=5 // pred_region
        %s72 = ssub.s32 %s11, 1
        // Predicated region
        $region13: #{tpu_custom_call.1} parent=11 // pred_check
          %p73 = pneg %p32
        $region14: #{tpu_custom_call.1} parent=11 // pred_check_branch
          %75 = sbr.rel (%p73) target = $region16
        $region15: #{tpu_custom_call.1} parent=11 // pred_region
          %s77 = ssub.s32 128, 128
          %78 = vsyncadd [#allocation3], %s77
          %s80 = sshll.u32 [#allocation2], 4
          %s81 = int_to_ptr.vmem [resolvable:$true] %s80
          %83 = dma.hbm_to_vmem [thread:$0]  %s0, 128, %s81, [#allocation3]
        $region16: #{tpu_custom_call.1} parent=11 // pred_fallthru
          _
      $region12: #{tpu_custom_call.1} parent=5 // pred_fallthru
        _
      %p84 = scmp.lt.s32.totalorder %s11, 2
      // Predicated region
      $region17: #{tpu_custom_call.1} parent=5 // pred_check
        %p85 = pneg %p84
      $region18: #{tpu_custom_call.1} parent=5 // pred_check_branch
        %87 = sbr.rel (%p85) target = $region20
      $region19: #{tpu_custom_call.1} parent=5 // pred_region
        _
      $region20: #{tpu_custom_call.1} parent=5 // pred_fallthru
        _
      %p88 = scmp.le.s32.totalorder 1, %s11
      %p89 = scmp.lt.s32.totalorder %s11, 3
      %p90 = pnand %p88, %p89
      %p91 = pneg %p90
      // Predicated region
      $region21: #{tpu_custom_call.1} parent=5 // pred_check
        _
      $region22: #{tpu_custom_call.1} parent=5 // pred_check_branch
        %93 = sbr.rel (%p90) target = $region24
      $region23: #{tpu_custom_call.1} parent=5 // pred_region
        %s94 = ssub.s32 %s11, 1
        // Predicated region
        $region25: #{tpu_custom_call.1} parent=23 // pred_check
          %p95 = pneg %p32
        $region26: #{tpu_custom_call.1} parent=23 // pred_check_branch
          %97 = sbr.rel (%p95) target = $region28
        $region27: #{tpu_custom_call.1} parent=23 // pred_region
          %98 = dma.done [#allocation3], 128
        $region28: #{tpu_custom_call.1} parent=23 // pred_fallthru
          _
        %p99 = pneg %p32
        %p100 = pneg %p29
        %p101 = pneg %p58
        %p102 = pneg %p55
        %s103 = sand.u32 %s45, 1
        %s104 = scalar_lea.sflag [#allocation4], %s103
        %s105 = sand.u32 %s45, 1
        %s106 = smul.addr %s105, 8
        %s107 = scalar_lea.vmem [#allocation5], %s106
        %v108 = vld [vmem:[#allocation2] sm:$0xff]
        %109 = vst [vmem:[%s107] sm:$0xff] %v108
        %s110 = sand.u32 %s45, 1
        %s111 = scalar_lea.sflag [#allocation4], %s110
        %s112 = sand.u32 %s45, 1
        %s113 = smul.addr %s112, 8
        %s114 = scalar_lea.vmem [#allocation5], %s113
        // Predicated region
        $region29: #{tpu_custom_call.1} parent=23 // pred_check
          %p115 = pneg %p55
        $region30: #{tpu_custom_call.1} parent=23 // pred_check_branch
          %117 = sbr.rel (%p115) target = $region32
        $region31: #{tpu_custom_call.1} parent=23 // pred_region
          %s119 = ssub.s32 128, 128
          %120 = vsyncadd %s111, %s119
          %s121 = smul.addr %s16, 128
          %s122 = scalar_lea.hbm %s1, %s121
          %s124 = sshll.u32 %s114, 4
          %s125 = int_to_ptr.vmem [resolvable:$true] %s124
          %127 = dma.vmem_to_hbm [thread:$0]  %s125, 128, %s122, %s111
        $region32: #{tpu_custom_call.1} parent=23 // pred_fallthru
          _
      $region24: #{tpu_custom_call.1} parent=5 // pred_fallthru
        _
      %p128 = scmp.le.s32.totalorder 2, %s11
      // Predicated region
      $region33: #{tpu_custom_call.1} parent=5 // pred_check
        %p129 = pneg %p128
      $region34: #{tpu_custom_call.1} parent=5 // pred_check_branch
        %131 = sbr.rel (%p129) target = $region36
      $region35: #{tpu_custom_call.1} parent=5 // pred_region
        %s132 = ssub.s32 %s11, 2
        // Predicated region
        $region37: #{tpu_custom_call.1} parent=35 // pred_check
          %p133 = pneg %p61
        $region38: #{tpu_custom_call.1} parent=35 // pred_check_branch
          %135 = sbr.rel (%p133) target = $region40
        $region39: #{tpu_custom_call.1} parent=35 // pred_region
          %s136 = sand.u32 %s46, 1
          %s137 = scalar_lea.sflag [#allocation4], %s136
          %s138 = sand.u32 %s46, 1
          %s139 = smul.addr %s138, 8
          %s140 = scalar_lea.vmem [#allocation5], %s139
          %141 = dma.done %s137, 128
        $region40: #{tpu_custom_call.1} parent=35 // pred_fallthru
          _
      $region36: #{tpu_custom_call.1} parent=5 // pred_fallthru
        _
    $region6: #{tpu_custom_call.1} parent=1 // loop_footer
      %s15 = sadd.s32 1, %s11
    $region7: #{tpu_custom_call.1} parent=1 // loop_footer_branch
      %10 = sbr.rel target = $region3
    $region8: #{tpu_custom_call.1} parent=1 // loop_exit
      _
    %142 = vsyncpa [#allocation3], 1
    %s143 = scalar_lea.sflag [#allocation3], 1
    %144 = vsyncpa %s143, 1
    %145 = vsyncpa [#allocation4], 1
    %s146 = scalar_lea.sflag [#allocation4], 1
    %147 = vsyncpa %s146, 1

// kernel: hoi_forward.4
$region0: #{hoi_forward.4}
  #allocation0 [shape = 'u32[]', space=smem, size = 0x4, offset = 0x4, fixed_abs, tag = 'smem constant byte address 0x4 - core index']
  #allocation1 [shape = 'u32[144,128]{1,0:T(1,128)}', space=vmem, size = 0x12000, scoped, tag = 'internal scratch']
  %s0 = inlined_call_operand.vmem [shape: f32[48,32], index: 0, kind: input, shape index: {}]
  %s1 = inlined_call_operand.vmem [shape: bf16[32,256], index: 1, kind: input, shape index: {}]
  %s2 = inlined_call_operand.vmem [shape: f32[1,256], index: 2, kind: input, shape index: {}]
  %s3 = inlined_call_operand.vmem [shape: bf16[32,32], index: 3, kind: input, shape index: {}]
  %s4 = inlined_call_operand.vmem [shape: f32[1,32], index: 4, kind: input, shape index: {}]
  %s5 = inlined_call_operand.vmem [shape: bf16[32,128], index: 5, kind: input, shape index: {}]
  %s6 = inlined_call_operand.vmem [shape: f32[1,128], index: 6, kind: input, shape index: {}]
  %s7 = inlined_call_operand.vmem [shape: bf16[32,32], index: 7, kind: input, shape index: {}]
  %s8 = inlined_call_operand.vmem [shape: f32[1,32], index: 8, kind: input, shape index: {}]
  %s9 = inlined_call_operand.vmem [shape: bf16[32,128], index: 9, kind: input, shape index: {}]
  %s10 = inlined_call_operand.vmem [shape: f32[1,128], index: 10, kind: input, shape index: {}]
  %s11 = inlined_call_operand.vmem [shape: f32[48,384], index: 11, kind: output, shape index: {}]
  %s12 = sld [smem:[#allocation0]]
  $region77: #{hoi_forward.4} parent=0
    _
  %s14 = ssub.s32 1, %s12
  %s15 = scalar_select 0, %s14, %s12
  loop: start=0, step=1, limit=4
  $region2: #{hoi_forward.4} parent=0 // loop_pre_header
    _
  $region3: #{hoi_forward.4} parent=0 // loop_header
    %s17 = sphi 0, %s21
    %p18 = scmp.ge.s32.totalorder %s17, 4
    %s27 = sphi 0, %s29
    %s30 = sphi 0, %s27
    %s31 = sphi 0, %s30
    %s47 = sphi 0, %s31
    %s51 = sphi 0, %s51
    %s53 = sphi 0, %s51
    %s54 = sphi 0, %s53
    %s68 = sphi 0, %s54
    %s72 = sphi 0, %s72
    %s74 = sphi 0, %s72
    %s75 = sphi 0, %s74
    %s89 = sphi 0, %s75
    %s93 = sphi 0, %s93
    %s95 = sphi 0, %s93
    %s96 = sphi 0, %s95
    %s110 = sphi 0, %s96
    %s114 = sphi 0, %s114
    %s116 = sphi 0, %s114
    %s117 = sphi 0, %s116
    %s131 = sphi 0, %s117
    %s135 = sphi 0, %s135
    %s137 = sphi 0, %s135
    %s138 = sphi 0, %s137
    %s152 = sphi 0, %s138
    %s156 = sphi 0, %s156
    %s158 = sphi 0, %s156
    %s159 = sphi 0, %s158
    %s173 = sphi 0, %s159
    %s177 = sphi 0, %s177
    %s179 = sphi 0, %s177
    %s180 = sphi 0, %s179
    %s194 = sphi 0, %s180
    %s198 = sphi 0, %s198
    %s200 = sphi 0, %s198
    %s201 = sphi 0, %s200
    %s215 = sphi 0, %s201
    %s219 = sphi 0, %s219
    %s221 = sphi 0, %s219
    %s222 = sphi 0, %s221
    %s236 = sphi 0, %s222
    %s240 = sphi 0, %s240
    %s242 = sphi 0, %s240
    %s243 = sphi 0, %s242
    %s257 = sphi 0, %s243
    %s263 = sphi 0, %s265
    %s266 = sphi 0, %s263
    %s267 = sphi 0, %s266
    %s283 = sphi 0, %s267
  $region4: #{hoi_forward.4} parent=0 // loop_header_branch
    %20 = sbr.rel (%p18) target = $region8
  $region5: #{hoi_forward.4} parent=0 // loop_body
    %s22 = ssub.s32 %s17, 1
    %s23 = ssub.s32 %s17, 2
    %s24 = sadd.s32 %s17, 1
    %s25 = ssub.s32 %s17, %s24
    %p26 = scmp.eq.s32.totalorder %s25, 0
    %s28 = sadd.s32 %s27, 1
    %s29 = scalar_select %p26, %s27, %s28
    %p32 = pneg %p26
    %p33 = scmp.eq.s32.totalorder %s17, 1
    %p34 = por %p32, %p33
    %p35 = scmp.ne.s32.totalorder %s27, %s30
    %p36 = scmp.eq.s32.totalorder %s17, 0
    %p37 = por %p35, %p36
    %p38 = scmp.ne.s32.totalorder %s27, %s30
    %p39 = scmp.eq.s32.totalorder %s22, 1
    %p40 = por %p38, %p39
    %p41 = scmp.ne.s32.totalorder %s30, %s31
    %p42 = scmp.eq.s32.totalorder %s22, 0
    %p43 = por %p41, %p42
    %p44 = scmp.ne.s32.totalorder %s30, %s31
    %p45 = scmp.eq.s32.totalorder %s23, 1
    %p46 = por %p44, %p45
    %p48 = scmp.ne.s32.totalorder %s31, %s47
    %p49 = scmp.eq.s32.totalorder %s23, 0
    %p50 = por %p48, %p49
    %s52 = sadd.s32 %s51, 1
    %p55 = scmp.eq.s32.totalorder %s17, 1
    %p56 = scmp.ne.s32.totalorder %s51, %s53
    %p57 = scmp.eq.s32.totalorder %s17, 0
    %p58 = por %p56, %p57
    %p59 = scmp.ne.s32.totalorder %s51, %s53
    %p60 = scmp.eq.s32.totalorder %s22, 1
    %p61 = por %p59, %p60
    %p62 = scmp.ne.s32.totalorder %s53, %s54
    %p63 = scmp.eq.s32.totalorder %s22, 0
    %p64 = por %p62, %p63
    %p65 = scmp.ne.s32.totalorder %s53, %s54
    %p66 = scmp.eq.s32.totalorder %s23, 1
    %p67 = por %p65, %p66
    %p69 = scmp.ne.s32.totalorder %s54, %s68
    %p70 = scmp.eq.s32.totalorder %s23, 0
    %p71 = por %p69, %p70
    %s73 = sadd.s32 %s72, 1
    %p76 = scmp.eq.s32.totalorder %s17, 1
    %p77 = scmp.ne.s32.totalorder %s72, %s74
    %p78 = scmp.eq.s32.totalorder %s17, 0
    %p79 = por %p77, %p78
    %p80 = scmp.ne.s32.totalorder %s72, %s74
    %p81 = scmp.eq.s32.totalorder %s22, 1
    %p82 = por %p80, %p81
    %p83 = scmp.ne.s32.totalorder %s74, %s75
    %p84 = scmp.eq.s32.totalorder %s22, 0
    %p85 = por %p83, %p84
    %p86 = scmp.ne.s32.totalorder %s74, %s75
    %p87 = scmp.eq.s32.totalorder %s23, 1
    %p88 = por %p86, %p87
    %p90 = scmp.ne.s32.totalorder %s75, %s89
    %p91 = scmp.eq.s32.totalorder %s23, 0
    %p92 = por %p90, %p91
    %s94 = sadd.s32 %s93, 1
    %p97 = scmp.eq.s32.totalorder %s17, 1
    %p98 = scmp.ne.s32.totalorder %s93, %s95
    %p99 = scmp.eq.s32.totalorder %s17, 0
    %p100 = por %p98, %p99
    %p101 = scmp.ne.s32.totalorder %s93, %s95
    %p102 = scmp.eq.s32.totalorder %s22, 1
    %p103 = por %p101, %p102
    %p104 = scmp.ne.s32.totalorder %s95, %s96
    %p105 = scmp.eq.s32.totalorder %s22, 0
    %p106 = por %p104, %p105
    %p107 = scmp.ne.s32.totalorder %s95, %s96
    %p108 = scmp.eq.s32.totalorder %s23, 1
    %p109 = por %p107, %p108
    %p111 = scmp.ne.s32.totalorder %s96, %s110
    %p112 = scmp.eq.s32.totalorder %s23, 0
    %p113 = por %p111, %p112
    %s115 = sadd.s32 %s114, 1
    %p118 = scmp.eq.s32.totalorder %s17, 1
    %p119 = scmp.ne.s32.totalorder %s114, %s116
    %p120 = scmp.eq.s32.totalorder %s17, 0
    %p121 = por %p119, %p120
    %p122 = scmp.ne.s32.totalorder %s114, %s116
    %p123 = scmp.eq.s32.totalorder %s22, 1
    %p124 = por %p122, %p123
    %p125 = scmp.ne.s32.totalorder %s116, %s117
    %p126 = scmp.eq.s32.totalorder %s22, 0
    %p127 = por %p125, %p126
    %p128 = scmp.ne.s32.totalorder %s116, %s117
    %p129 = scmp.eq.s32.totalorder %s23, 1
    %p130 = por %p128, %p129
    %p132 = scmp.ne.s32.totalorder %s117, %s131
    %p133 = scmp.eq.s32.totalorder %s23, 0
    %p134 = por %p132, %p133
    %s136 = sadd.s32 %s135, 1
    %p139 = scmp.eq.s32.totalorder %s17, 1
    %p140 = scmp.ne.s32.totalorder %s135, %s137
    %p141 = scmp.eq.s32.totalorder %s17, 0
    %p142 = por %p140, %p141
    %p143 = scmp.ne.s32.totalorder %s135, %s137
    %p144 = scmp.eq.s32.totalorder %s22, 1
    %p145 = por %p143, %p144
    %p146 = scmp.ne.s32.totalorder %s137, %s138
    %p147 = scmp.eq.s32.totalorder %s22, 0
    %p148 = por %p146, %p147
    %p149 = scmp.ne.s32.totalorder %s137, %s138
    %p150 = scmp.eq.s32.totalorder %s23, 1
    %p151 = por %p149, %p150
    %p153 = scmp.ne.s32.totalorder %s138, %s152
    %p154 = scmp.eq.s32.totalorder %s23, 0
    %p155 = por %p153, %p154
    %s157 = sadd.s32 %s156, 1
    %p160 = scmp.eq.s32.totalorder %s17, 1
    %p161 = scmp.ne.s32.totalorder %s156, %s158
    %p162 = scmp.eq.s32.totalorder %s17, 0
    %p163 = por %p161, %p162
    %p164 = scmp.ne.s32.totalorder %s156, %s158
    %p165 = scmp.eq.s32.totalorder %s22, 1
    %p166 = por %p164, %p165
    %p167 = scmp.ne.s32.totalorder %s158, %s159
    %p168 = scmp.eq.s32.totalorder %s22, 0
    %p169 = por %p167, %p168
    %p170 = scmp.ne.s32.totalorder %s158, %s159
    %p171 = scmp.eq.s32.totalorder %s23, 1
    %p172 = por %p170, %p171
    %p174 = scmp.ne.s32.totalorder %s159, %s173
    %p175 = scmp.eq.s32.totalorder %s23, 0
    %p176 = por %p174, %p175
    %s178 = sadd.s32 %s177, 1
    %p181 = scmp.eq.s32.totalorder %s17, 1
    %p182 = scmp.ne.s32.totalorder %s177, %s179
    %p183 = scmp.eq.s32.totalorder %s17, 0
    %p184 = por %p182, %p183
    %p185 = scmp.ne.s32.totalorder %s177, %s179
    %p186 = scmp.eq.s32.totalorder %s22, 1
    %p187 = por %p185, %p186
    %p188 = scmp.ne.s32.totalorder %s179, %s180
    %p189 = scmp.eq.s32.totalorder %s22, 0
    %p190 = por %p188, %p189
    %p191 = scmp.ne.s32.totalorder %s179, %s180
    %p192 = scmp.eq.s32.totalorder %s23, 1
    %p193 = por %p191, %p192
    %p195 = scmp.ne.s32.totalorder %s180, %s194
    %p196 = scmp.eq.s32.totalorder %s23, 0
    %p197 = por %p195, %p196
    %s199 = sadd.s32 %s198, 1
    %p202 = scmp.eq.s32.totalorder %s17, 1
    %p203 = scmp.ne.s32.totalorder %s198, %s200
    %p204 = scmp.eq.s32.totalorder %s17, 0
    %p205 = por %p203, %p204
    %p206 = scmp.ne.s32.totalorder %s198, %s200
    %p207 = scmp.eq.s32.totalorder %s22, 1
    %p208 = por %p206, %p207
    %p209 = scmp.ne.s32.totalorder %s200, %s201
    %p210 = scmp.eq.s32.totalorder %s22, 0
    %p211 = por %p209, %p210
    %p212 = scmp.ne.s32.totalorder %s200, %s201
    %p213 = scmp.eq.s32.totalorder %s23, 1
    %p214 = por %p212, %p213
    %p216 = scmp.ne.s32.totalorder %s201, %s215
    %p217 = scmp.eq.s32.totalorder %s23, 0
    %p218 = por %p216, %p217
    %s220 = sadd.s32 %s219, 1
    %p223 = scmp.eq.s32.totalorder %s17, 1
    %p224 = scmp.ne.s32.totalorder %s219, %s221
    %p225 = scmp.eq.s32.totalorder %s17, 0
    %p226 = por %p224, %p225
    %p227 = scmp.ne.s32.totalorder %s219, %s221
    %p228 = scmp.eq.s32.totalorder %s22, 1
    %p229 = por %p227, %p228
    %p230 = scmp.ne.s32.totalorder %s221, %s222
    %p231 = scmp.eq.s32.totalorder %s22, 0
    %p232 = por %p230, %p231
    %p233 = scmp.ne.s32.totalorder %s221, %s222
    %p234 = scmp.eq.s32.totalorder %s23, 1
    %p235 = por %p233, %p234
    %p237 = scmp.ne.s32.totalorder %s222, %s236
    %p238 = scmp.eq.s32.totalorder %s23, 0
    %p239 = por %p237, %p238
    %s241 = sadd.s32 %s240, 1
    %p244 = scmp.eq.s32.totalorder %s17, 1
    %p245 = scmp.ne.s32.totalorder %s240, %s242
    %p246 = scmp.eq.s32.totalorder %s17, 0
    %p247 = por %p245, %p246
    %p248 = scmp.ne.s32.totalorder %s240, %s242
    %p249 = scmp.eq.s32.totalorder %s22, 1
    %p250 = por %p248, %p249
    %p251 = scmp.ne.s32.totalorder %s242, %s243
    %p252 = scmp.eq.s32.totalorder %s22, 0
    %p253 = por %p251, %p252
    %p254 = scmp.ne.s32.totalorder %s242, %s243
    %p255 = scmp.eq.s32.totalorder %s23, 1
    %p256 = por %p254, %p255
    %p258 = scmp.ne.s32.totalorder %s243, %s257
    %p259 = scmp.eq.s32.totalorder %s23, 0
    %p260 = por %p258, %p259
    %s261 = ssub.s32 %s17, %s24
    %p262 = scmp.eq.s32.totalorder %s261, 0
    %s264 = sadd.s32 %s263, 1
    %s265 = scalar_select %p262, %s263, %s264
    %p268 = pneg %p262
    %p269 = scmp.eq.s32.totalorder %s17, 1
    %p270 = por %p268, %p269
    %p271 = scmp.ne.s32.totalorder %s263, %s266
    %p272 = scmp.eq.s32.totalorder %s17, 0
    %p273 = por %p271, %p272
    %p274 = scmp.ne.s32.totalorder %s263, %s266
    %p275 = scmp.eq.s32.totalorder %s22, 1
    %p276 = por %p274, %p275
    %p277 = scmp.ne.s32.totalorder %s266, %s267
    %p278 = scmp.eq.s32.totalorder %s22, 0
    %p279 = por %p277, %p278
    %p280 = scmp.ne.s32.totalorder %s266, %s267
    %p281 = scmp.eq.s32.totalorder %s23, 1
    %p282 = por %p280, %p281
    %p284 = scmp.ne.s32.totalorder %s267, %s283
    %p285 = scmp.eq.s32.totalorder %s23, 0
    %p286 = por %p284, %p285
    %p287 = scmp.le.s32.totalorder 1, %s17
    %p288 = scmp.lt.s32.totalorder %s17, 3
    %p289 = pnand %p287, %p288
    %p290 = pneg %p289
    // Predicated region
    $region9: #{hoi_forward.4} parent=5 // pred_check
      _
    $region10: #{hoi_forward.4} parent=5 // pred_check_branch
      %292 = sbr.rel (%p289) target = $region12
    $region11: #{hoi_forward.4} parent=5 // pred_region
      %s293 = ssub.s32 %s17, 1
      // Predicated region
      $region13: #{hoi_forward.4} parent=11 // pred_check
        %p294 = pneg %p64
      $region14: #{hoi_forward.4} parent=11 // pred_check_branch
        %296 = sbr.rel (%p294) target = $region16
      $region15: #{hoi_forward.4} parent=11 // pred_region
        _
      $region16: #{hoi_forward.4} parent=11 // pred_fallthru
        _
      // Predicated region
      $region17: #{hoi_forward.4} parent=11 // pred_check
        %p297 = pneg %p85
      $region18: #{hoi_forward.4} parent=11 // pred_check_branch
        %299 = sbr.rel (%p297) target = $region20
      $region19: #{hoi_forward.4} parent=11 // pred_region
        _
      $region20: #{hoi_forward.4} parent=11 // pred_fallthru
        _
      // Predicated region
      $region21: #{hoi_forward.4} parent=11 // pred_check
        %p300 = pneg %p106
      $region22: #{hoi_forward.4} parent=11 // pred_check_branch
        %302 = sbr.rel (%p300) target = $region24
      $region23: #{hoi_forward.4} parent=11 // pred_region
        _
      $region24: #{hoi_forward.4} parent=11 // pred_fallthru
        _
      // Predicated region
      $region25: #{hoi_forward.4} parent=11 // pred_check
        %p303 = pneg %p127
      $region26: #{hoi_forward.4} parent=11 // pred_check_branch
        %305 = sbr.rel (%p303) target = $region28
      $region27: #{hoi_forward.4} parent=11 // pred_region
        _
      $region28: #{hoi_forward.4} parent=11 // pred_fallthru
        _
      // Predicated region
      $region29: #{hoi_forward.4} parent=11 // pred_check
        %p306 = pneg %p148
      $region30: #{hoi_forward.4} parent=11 // pred_check_branch
        %308 = sbr.rel (%p306) target = $region32
      $region31: #{hoi_forward.4} parent=11 // pred_region
        _
      $region32: #{hoi_forward.4} parent=11 // pred_fallthru
        _
      // Predicated region
      $region33: #{hoi_forward.4} parent=11 // pred_check
        %p309 = pneg %p169
      $region34: #{hoi_forward.4} parent=11 // pred_check_branch
        %311 = sbr.rel (%p309) target = $region36
      $region35: #{hoi_forward.4} parent=11 // pred_region
        _
      $region36: #{hoi_forward.4} parent=11 // pred_fallthru
        _
      // Predicated region
      $region37: #{hoi_forward.4} parent=11 // pred_check
        %p312 = pneg %p190
      $region38: #{hoi_forward.4} parent=11 // pred_check_branch
        %314 = sbr.rel (%p312) target = $region40
      $region39: #{hoi_forward.4} parent=11 // pred_region
        _
      $region40: #{hoi_forward.4} parent=11 // pred_fallthru
        _
      // Predicated region
      $region41: #{hoi_forward.4} parent=11 // pred_check
        %p315 = pneg %p211
      $region42: #{hoi_forward.4} parent=11 // pred_check_branch
        %317 = sbr.rel (%p315) target = $region44
      $region43: #{hoi_forward.4} parent=11 // pred_region
        _
      $region44: #{hoi_forward.4} parent=11 // pred_fallthru
        _
      // Predicated region
      $region45: #{hoi_forward.4} parent=11 // pred_check
        %p318 = pneg %p232
      $region46: #{hoi_forward.4} parent=11 // pred_check_branch
        %320 = sbr.rel (%p318) target = $region48
      $region47: #{hoi_forward.4} parent=11 // pred_region
        _
      $region48: #{hoi_forward.4} parent=11 // pred_fallthru
        _
      // Predicated region
      $region49: #{hoi_forward.4} parent=11 // pred_check
        %p321 = pneg %p253
      $region50: #{hoi_forward.4} parent=11 // pred_check_branch
        %323 = sbr.rel (%p321) target = $region52
      $region51: #{hoi_forward.4} parent=11 // pred_region
        _
      $region52: #{hoi_forward.4} parent=11 // pred_fallthru
        _
    $region12: #{hoi_forward.4} parent=5 // pred_fallthru
      _
    %p324 = scmp.lt.s32.totalorder %s17, 2
    // Predicated region
    $region53: #{hoi_forward.4} parent=5 // pred_check
      %p325 = pneg %p324
    $region54: #{hoi_forward.4} parent=5 // pred_check_branch
      %327 = sbr.rel (%p325) target = $region56
    $region55: #{hoi_forward.4} parent=5 // pred_region
      // Predicated region
      $region57: #{hoi_forward.4} parent=55 // pred_check
        %p328 = pneg %p37
      $region58: #{hoi_forward.4} parent=55 // pred_check_branch
        %330 = sbr.rel (%p328) target = $region60
      $region59: #{hoi_forward.4} parent=55 // pred_region
        %s331 = smul.u32 3, %s17
        %p332 = scmp.lt.s32.totalorder %s331, 5
        %s333 = scalar_select %p332, %s331, 5
        %s334 = smul.addr %s333, 8
        %s335 = scalar_lea.vmem %s0, %s334
        %s336 = smul.u32 3, %s17
      $region60: #{hoi_forward.4} parent=55 // pred_fallthru
        _
    $region56: #{hoi_forward.4} parent=5 // pred_fallthru
      _
    %p337 = scmp.le.s32.totalorder 1, %s17
    %p338 = scmp.lt.s32.totalorder %s17, 3
    %p339 = pnand %p337, %p338
    %p340 = pneg %p339
    // Predicated region
    $region61: #{hoi_forward.4} parent=5 // pred_check
      _
    $region62: #{hoi_forward.4} parent=5 // pred_check_branch
      %342 = sbr.rel (%p339) target = $region64
    $region63: #{hoi_forward.4} parent=5 // pred_region
      %s343 = ssub.s32 %s17, 1
      %s344 = smul.u32 3, %s22
      %p345 = scmp.lt.s32.totalorder %s344, 5
      %s346 = scalar_select %p345, %s344, 5
      %s347 = smul.addr %s346, 8
      %s348 = scalar_lea.vmem %s0, %s347
      %p349 = pneg %p43
      %p350 = pneg %p40
      %p351 = pneg %p64
      %p352 = pneg %p61
      %p353 = pneg %p85
      %p354 = pneg %p82
      %p355 = pneg %p106
      %p356 = pneg %p103
      %p357 = pneg %p127
      %p358 = pneg %p124
      %p359 = pneg %p148
      %p360 = pneg %p145
      %p361 = pneg %p169
      %p362 = pneg %p166
      %p363 = pneg %p190
      %p364 = pneg %p187
      %p365 = pneg %p211
      %p366 = pneg %p208
      %p367 = pneg %p232
      %p368 = pneg %p229
      %p369 = pneg %p253
      %p370 = pneg %p250
      %p371 = pneg %p279
      %p372 = pneg %p276
      %s373 = smul.u32 3, %s22
      %p374 = scmp.lt.s32.totalorder %s373, 5
      %s375 = scalar_select %p374, %s373, 5
      %s376 = smul.addr %s375, 3
      %s377 = smul.addr %s376, 8
      %s378 = scalar_lea.vmem %s11, %s377
      %s379 = smul.u32 3, %s22
      %p380 = scmp.lt.s32.totalorder %s379, 5
      %s381 = scalar_select %p380, %s379, 5
      %s382 = smul.addr %s381, 8
      %s383 = scalar_lea.vmem %s0, %s382
      %s384 = smul.u32 3, %s22
      %s385 = smul.u32 3, %s22
      %p386 = scmp.lt.s32.totalorder %s385, 5
      %s387 = scalar_select %p386, %s385, 5
      %s388 = smul.addr %s387, 3
      %s389 = smul.addr %s388, 8
      %s390 = scalar_lea.vmem %s11, %s389
      %s391 = smul.u32 3, %s22
      %v393 = vld [vmem:[%s383] sm:$0xff]
      %v394 = vld [vmem:[%s383 + $0x8] sm:$0xff]
      %v395 = vld [vmem:[%s383 + $0x10] sm:$0xff]
      %v396 = vpack.c.bf16 %v394, %v393
      %v397 = vpack.c.bf16 %v395, %v395
      %v398 = vld [vmem:[%s1] sm:$0xff]
      %v399 = vld [vmem:[%s1 + $0x8] sm:$0xff]
      %v400 = vld [vmem:[%s1 + $0x10] sm:$0xff]
      %v401 = vld [vmem:[%s1 + $0x18] sm:$0xff]
      %v402 = vld [vmem:[%s2] sm:$0x3]
      %v404 = vlaneseq
      %v405 = vshrl.u32 %v404, 7
      %v406 = vsub.s32 0, %v405
      %v407 = vrot.slane %v402, %v406
      %v408 = vlaneseq
      %v409 = vshrl.u32 %v408, 7
      %v410 = vsub.s32 1, %v409
      %v411 = vrot.slane %v402, %v410
      %v418 = vunpack.c.l.b16 %v398
      %v419 = vunpack.c.h.b16 %v398
      %v420 = vunpack.c.l.b16 %v399
      %v421 = vunpack.c.h.b16 %v399
      %v422 = vunpack.c.l.b16 %v400
      %v423 = vunpack.c.h.b16 %v400
      %v424 = vunpack.c.l.b16 %v401
      %v425 = vunpack.c.h.b16 %v401
      %v426 = vpack.c.b16 %v420, %v418
      %v427 = vpack.c.b16 %v421, %v419
      %v428 = vpack.c.b16 %v424, %v422
      %v429 = vpack.c.b16 %v425, %v423
      %vm434 = vcmask 261120
      %v436 = vsel %vm434, %v396, 0
      %v439 = vsel %vm434, %v397, 0
      %441 = vmatprep.subr.bf16.mxu0 %v427
      %442 = vmatpush1.bf16.msra.mxu0 %v426
      %443 = vmatprep.subr.bf16.mxu0 %v429
      %444 = vmatpush1.bf16.msra.mxu0 %v428
      %445 = vmatprep.subr.bf16.mxu0 0
      %446 = vmatpush1.bf16.msra.mxu0 0
      %447 = vmatprep.subr.bf16.mxu0 0
      %448 = vmatpush1.bf16.msra.mxu0 0
      %449 = vmatprep.subr.bf16.mxu0 0
      %450 = vmatpush1.bf16.msra.mxu0 0
      %451 = vmatprep.subr.bf16.mxu0 0
      %452 = vmatpush1.bf16.msra.mxu0 0
      %453 = vmatprep.subr.bf16.mxu0 0
      %454 = vmatpush1.bf16.msra.mxu0 0
      %455 = vmatprep.subr.bf16.mxu0 0
      %456 = vmatpush1.bf16.msra.mxu0 0
      %457 = vmatprep.subr.bf16.mxu0 0
      %458 = vmatpush1.bf16.msra.mxu0 0
      %459 = vmatprep.subr.bf16.mxu0 0
      %460 = vmatpush1.bf16.msra.mxu0 0
      %461 = vmatprep.subr.bf16.mxu0 0
      %462 = vmatpush1.bf16.msra.mxu0 0
      %463 = vmatprep.subr.bf16.mxu0 0
      %464 = vmatpush1.bf16.msra.mxu0 0
      %465 = vmatprep.subr.bf16.mxu0 0
      %466 = vmatpush1.bf16.msra.mxu0 0
      %467 = vmatprep.subr.bf16.mxu0 0
      %468 = vmatpush1.bf16.msra.mxu0 0
      %469 = vmatprep.subr.bf16.mxu0 0
      %470 = vmatpush1.bf16.msra.mxu0 0
      %471 = vmatprep.subr.bf16.mxu0 0
      %472 = vmatpush1.bf16.msra.mxu0 0
      %473 = vmatprep.mubr.bf16.mxu0 0
      %474 = vmatmul.mubr.bf16.gmra.mrb[0].mxu0 %v436
      %v475 = vpop.f32.mrb[0].mxu0
      %v476 = vadd.f32 %v407, %v475
      %v477 = vpop.f32.mrb[0].mxu0
      %v478 = vadd.f32 %v411, %v477
      %v479 = vpop.f32.mrb[0].mxu0
      %v480 = vadd.f32 %v407, %v479
      %v481 = vpop.f32.mrb[0].mxu0
      %v482 = vadd.f32 %v411, %v481
      %483 = vmatprep.mubr.bf16.mxu0 0
      %484 = vmatmul.mubr.bf16.gmra.mrb[0].mxu0 %v439
      %v485 = vpop.f32.mrb[0].mxu0
      %v486 = vadd.f32 %v407, %v485
      %v487 = vpop.f32.mrb[0].mxu0
      %v488 = vadd.f32 %v411, %v487
      %v489 = vpop.f32.mrb[0].mxu0
      %v490 = vpop.f32.mrb[0].mxu0
      %491 = vdwg.mxu0
      %492 = vst [vmem:[%s390] sm:$0xff] %v476
      %493 = vst [vmem:[%s390 + $0x18] sm:$0xff] %v480
      %494 = vst [vmem:[%s390 + $0x30] sm:$0xff] %v486
      %v495 = vmax.f32 %v478, 0.0
      %v496 = vmax.f32 %v482, 0.0
      %v497 = vmax.f32 %v488, 0.0
      %v498 = vpack.c.bf16 %v496, %v495
      %v499 = vpack.c.bf16 %v497, %v497
      %v500 = vld [vmem:[%s3] sm:$0xf]
      %v501 = vld [vmem:[%s3 + $0x4] sm:$0xf]
      %v502 = vld [vmem:[%s3 + $0x8] sm:$0xf]
      %v503 = vld [vmem:[%s3 + $0xc] sm:$0xf]
      %v504 = vld [vmem:[%s4] sm:$0x1]
      %v506 = vlaneseq
      %v507 = vshrl.u32 %v506, 7
      %v508 = vsub.s32 0, %v507
      %v509 = vrot.slane %v504, %v508
      %v515 = vunpack.c.l.b16 %v500
      %v516 = vunpack.c.l.b16 %v501
      %v517 = vunpack.c.l.b16 %v502
      %v518 = vunpack.c.l.b16 %v503
      %v519 = vpack.c.b16 %v516, %v515
      %v520 = vpack.c.b16 %v518, %v517
      %v524 = vsel %vm434, %v498, 0
      %v527 = vsel %vm434, %v499, 0
      %529 = vmatprep.subr.bf16.mxu0 0
      %530 = vmatpush1.bf16.msra.mxu0 %v519
      %531 = vmatprep.subr.bf16.mxu0 0
      %532 = vmatpush1.bf16.msra.mxu0 %v520
      %533 = vmatprep.subr.bf16.mxu0 0
      %534 = vmatpush1.bf16.msra.mxu0 0
      %535 = vmatprep.subr.bf16.mxu0 0
      %536 = vmatpush1.bf16.msra.mxu0 0
      %537 = vmatprep.subr.bf16.mxu0 0
      %538 = vmatpush1.bf16.msra.mxu0 0
      %539 = vmatprep.subr.bf16.mxu0 0
      %540 = vmatpush1.bf16.msra.mxu0 0
      %541 = vmatprep.subr.bf16.mxu0 0
      %542 = vmatpush1.bf16.msra.mxu0 0
      %543 = vmatprep.subr.bf16.mxu0 0
      %544 = vmatpush1.bf16.msra.mxu0 0
      %545 = vmatprep.subr.bf16.mxu0 0
      %546 = vmatpush1.bf16.msra.mxu0 0
      %547 = vmatprep.subr.bf16.mxu0 0
      %548 = vmatpush1.bf16.msra.mxu0 0
      %549 = vmatprep.subr.bf16.mxu0 0
      %550 = vmatpush1.bf16.msra.mxu0 0
      %551 = vmatprep.subr.bf16.mxu0 0
      %552 = vmatpush1.bf16.msra.mxu0 0
      %553 = vmatprep.subr.bf16.mxu0 0
      %554 = vmatpush1.bf16.msra.mxu0 0
      %555 = vmatprep.subr.bf16.mxu0 0
      %556 = vmatpush1.bf16.msra.mxu0 0
      %557 = vmatprep.subr.bf16.mxu0 0
      %558 = vmatpush1.bf16.msra.mxu0 0
      %559 = vmatprep.subr.bf16.mxu0 0
      %560 = vmatpush1.bf16.msra.mxu0 0
      %561 = vmatprep.mubr.bf16.mxu0 0
      %562 = vmatmul.mubr.bf16.gmra.mrb[0].mxu0 %v524
      %v563 = vpop.f32.mrb[0].mxu0
      %v564 = vadd.f32 %v509, %v563
      %v565 = vpop.f32.mrb[0].mxu0
      %v566 = vpop.f32.mrb[0].mxu0
      %v567 = vadd.f32 %v509, %v566
      %v568 = vpop.f32.mrb[0].mxu0
      %569 = vmatprep.mubr.bf16.mxu0 0
      %570 = vmatmul.mubr.bf16.gmra.mrb[0].mxu0 %v527
      %v571 = vpop.f32.mrb[0].mxu0
      %v572 = vadd.f32 %v509, %v571
      %v573 = vpop.f32.mrb[0].mxu0
      %v574 = vpop.f32.mrb[0].mxu0
      %v575 = vpop.f32.mrb[0].mxu0
      %576 = vdwg.mxu0
      %v577 = vmax.f32 %v564, 0.0
      %v578 = vmax.f32 %v567, 0.0
      %v579 = vmax.f32 %v572, 0.0
      %v580 = vpack.c.bf16 %v578, %v577
      %v581 = vpack.c.bf16 %v579, %v579
      %v582 = vld [vmem:[%s5] sm:$0xf]
      %v583 = vld [vmem:[%s5 + $0x4] sm:$0xf]
      %v584 = vld [vmem:[%s5 + $0x8] sm:$0xf]
      %v585 = vld [vmem:[%s5 + $0xc] sm:$0xf]
      %v586 = vld [vmem:[%s6] sm:$0x1]
      %v588 = vlaneseq
      %v589 = vshrl.u32 %v588, 7
      %v590 = vsub.s32 0, %v589
      %v591 = vrot.slane %v586, %v590
      %v597 = vunpack.c.l.b16 %v582
      %v598 = vunpack.c.l.b16 %v583
      %v599 = vunpack.c.l.b16 %v584
      %v600 = vunpack.c.l.b16 %v585
      %v601 = vpack.c.b16 %v598, %v597
      %v602 = vpack.c.b16 %v600, %v599
      %v606 = vsel %vm434, %v580, 0
      %v609 = vsel %vm434, %v581, 0
      %611 = vmatprep.subr.bf16.mxu0 0
      %612 = vmatpush1.bf16.msra.mxu0 %v601
      %613 = vmatprep.subr.bf16.mxu0 0
      %614 = vmatpush1.bf16.msra.mxu0 %v602
      %615 = vmatprep.subr.bf16.mxu0 0
      %616 = vmatpush1.bf16.msra.mxu0 0
      %617 = vmatprep.subr.bf16.mxu0 0
      %618 = vmatpush1.bf16.msra.mxu0 0
      %619 = vmatprep.subr.bf16.mxu0 0
      %620 = vmatpush1.bf16.msra.mxu0 0
      %621 = vmatprep.subr.bf16.mxu0 0
      %622 = vmatpush1.bf16.msra.mxu0 0
      %623 = vmatprep.subr.bf16.mxu0 0
      %624 = vmatpush1.bf16.msra.mxu0 0
      %625 = vmatprep.subr.bf16.mxu0 0
      %626 = vmatpush1.bf16.msra.mxu0 0
      %627 = vmatprep.subr.bf16.mxu0 0
      %628 = vmatpush1.bf16.msra.mxu0 0
      %629 = vmatprep.subr.bf16.mxu0 0
      %630 = vmatpush1.bf16.msra.mxu0 0
      %631 = vmatprep.subr.bf16.mxu0 0
      %632 = vmatpush1.bf16.msra.mxu0 0
      %633 = vmatprep.subr.bf16.mxu0 0
      %634 = vmatpush1.bf16.msra.mxu0 0
      %635 = vmatprep.subr.bf16.mxu0 0
      %636 = vmatpush1.bf16.msra.mxu0 0
      %637 = vmatprep.subr.bf16.mxu0 0
      %638 = vmatpush1.bf16.msra.mxu0 0
      %639 = vmatprep.subr.bf16.mxu0 0
      %640 = vmatpush1.bf16.msra.mxu0 0
      %641 = vmatprep.subr.bf16.mxu0 0
      %642 = vmatpush1.bf16.msra.mxu0 0
      %643 = vmatprep.mubr.bf16.mxu0 0
      %644 = vmatmul.mubr.bf16.gmra.mrb[0].mxu0 %v606
      %v645 = vpop.f32.mrb[0].mxu0
      %v646 = vadd.f32 %v591, %v645
      %v647 = vpop.f32.mrb[0].mxu0
      %v648 = vpop.f32.mrb[0].mxu0
      %v649 = vadd.f32 %v591, %v648
      %v650 = vpop.f32.mrb[0].mxu0
      %651 = vmatprep.mubr.bf16.mxu0 0
      %652 = vmatmul.mubr.bf16.gmra.mrb[0].mxu0 %v609
      %v653 = vpop.f32.mrb[0].mxu0
      %v654 = vadd.f32 %v591, %v653
      %v655 = vpop.f32.mrb[0].mxu0
      %v656 = vpop.f32.mrb[0].mxu0
      %v657 = vpop.f32.mrb[0].mxu0
      %658 = vdwg.mxu0
      %v659 = vxor.u32 %v646, 2147483648
      %v660 = vxor.u32 %v649, 2147483648
      %v661 = vxor.u32 %v654, 2147483648
      %v662 = vmul.f32 %v659, 1.442695
      %v663 = vpow.pop %v662
      %v664 = vmul.f32 %v660, 1.442695
      %v665 = vpow.pop %v664
      %v666 = vmul.f32 %v661, 1.442695
      %v667 = vpow.pop %v666
      %v668 = vadd.f32 %v663, 1.0
      %v669 = vadd.f32 %v665, 1.0
      %v670 = vadd.f32 %v667, 1.0
      %v671 = vrcp.pop %v668
      %v672 = vmul.f32 1.0, %v671
      %v673 = vrcp.pop %v669
      %v674 = vmul.f32 1.0, %v673
      %v675 = vrcp.pop %v670
      %v676 = vmul.f32 1.0, %v675
      %677 = vst [vmem:[%s390 + $0x8] sm:$0xff] %v672
      %678 = vst [vmem:[%s390 + $0x20] sm:$0xff] %v674
      %679 = vst [vmem:[%s390 + $0x38] sm:$0xff] %v676
      %v680 = vld [vmem:[%s7] sm:$0xf]
      %v681 = vld [vmem:[%s7 + $0x4] sm:$0xf]
      %v682 = vld [vmem:[%s7 + $0x8] sm:$0xf]
      %v683 = vld [vmem:[%s7 + $0xc] sm:$0xf]
      %v684 = vld [vmem:[%s8] sm:$0x1]
      %v686 = vlaneseq
      %v687 = vshrl.u32 %v686, 7
      %v688 = vsub.s32 0, %v687
      %v689 = vrot.slane %v684, %v688
      %693 = vrot.lane.b32.xlu0 %v498, 96
      %v694 = vpop.permute.xlu0 %693
      %695 = vrot.lane.b32.xlu0 %v499, 96
      %v696 = vpop.permute.xlu0 %695
      %v701 = vunpack.c.l.b16 %v680
      %v702 = vunpack.c.l.b16 %v681
      %v703 = vunpack.c.l.b16 %v682
      %v704 = vunpack.c.l.b16 %v683
      %v705 = vpack.c.b16 %v702, %v701
      %v706 = vpack.c.b16 %v704, %v703
      %v710 = vsel %vm434, %v694, 0
      %v713 = vsel %vm434, %v696, 0
      %715 = vmatprep.subr.bf16.mxu0 0
      %716 = vmatpush1.bf16.msra.mxu0 %v705
      %717 = vmatprep.subr.bf16.mxu0 0
      %718 = vmatpush1.bf16.msra.mxu0 %v706
      %719 = vmatprep.subr.bf16.mxu0 0
      %720 = vmatpush1.bf16.msra.mxu0 0
      %721 = vmatprep.subr.bf16.mxu0 0
      %722 = vmatpush1.bf16.msra.mxu0 0
      %723 = vmatprep.subr.bf16.mxu0 0
      %724 = vmatpush1.bf16.msra.mxu0 0
      %725 = vmatprep.subr.bf16.mxu0 0
      %726 = vmatpush1.bf16.msra.mxu0 0
      %727 = vmatprep.subr.bf16.mxu0 0
      %728 = vmatpush1.bf16.msra.mxu0 0
      %729 = vmatprep.subr.bf16.mxu0 0
      %730 = vmatpush1.bf16.msra.mxu0 0
      %731 = vmatprep.subr.bf16.mxu0 0
      %732 = vmatpush1.bf16.msra.mxu0 0
      %733 = vmatprep.subr.bf16.mxu0 0
      %734 = vmatpush1.bf16.msra.mxu0 0
      %735 = vmatprep.subr.bf16.mxu0 0
      %736 = vmatpush1.bf16.msra.mxu0 0
      %737 = vmatprep.subr.bf16.mxu0 0
      %738 = vmatpush1.bf16.msra.mxu0 0
      %739 = vmatprep.subr.bf16.mxu0 0
      %740 = vmatpush1.bf16.msra.mxu0 0
      %741 = vmatprep.subr.bf16.mxu0 0
      %742 = vmatpush1.bf16.msra.mxu0 0
      %743 = vmatprep.subr.bf16.mxu0 0
      %744 = vmatpush1.bf16.msra.mxu0 0
      %745 = vmatprep.subr.bf16.mxu0 0
      %746 = vmatpush1.bf16.msra.mxu0 0
      %747 = vmatprep.mubr.bf16.mxu0 0
      %748 = vmatmul.mubr.bf16.gmra.mrb[0].mxu0 %v710
      %v749 = vpop.f32.mrb[0].mxu0
      %v750 = vadd.f32 %v689, %v749
      %v751 = vpop.f32.mrb[0].mxu0
      %v752 = vpop.f32.mrb[0].mxu0
      %v753 = vadd.f32 %v689, %v752
      %v754 = vpop.f32.mrb[0].mxu0
      %755 = vmatprep.mubr.bf16.mxu0 0
      %756 = vmatmul.mubr.bf16.gmra.mrb[0].mxu0 %v713
      %v757 = vpop.f32.mrb[0].mxu0
      %v758 = vadd.f32 %v689, %v757
      %v759 = vpop.f32.mrb[0].mxu0
      %v760 = vpop.f32.mrb[0].mxu0
      %v761 = vpop.f32.mrb[0].mxu0
      %762 = vdwg.mxu0
      %v763 = vmax.f32 %v750, 0.0
      %v764 = vmax.f32 %v753, 0.0
      %v765 = vmax.f32 %v758, 0.0
      %v766 = vpack.c.bf16 %v764, %v763
      %v767 = vpack.c.bf16 %v765, %v765
      %v768 = vld [vmem:[%s9] sm:$0xf]
      %v769 = vld [vmem:[%s9 + $0x4] sm:$0xf]
      %v770 = vld [vmem:[%s9 + $0x8] sm:$0xf]
      %v771 = vld [vmem:[%s9 + $0xc] sm:$0xf]
      %v772 = vld [vmem:[%s10] sm:$0x1]
      %v774 = vlaneseq
      %v775 = vshrl.u32 %v774, 7
      %v776 = vsub.s32 0, %v775
      %v777 = vrot.slane %v772, %v776
      %v783 = vunpack.c.l.b16 %v768
      %v784 = vunpack.c.l.b16 %v769
      %v785 = vunpack.c.l.b16 %v770
      %v786 = vunpack.c.l.b16 %v771
      %v787 = vpack.c.b16 %v784, %v783
      %v788 = vpack.c.b16 %v786, %v785
      %v792 = vsel %vm434, %v766, 0
      %v795 = vsel %vm434, %v767, 0
      %797 = vmatprep.subr.bf16.mxu0 0
      %798 = vmatpush1.bf16.msra.mxu0 %v787
      %799 = vmatprep.subr.bf16.mxu0 0
      %800 = vmatpush1.bf16.msra.mxu0 %v788
      %801 = vmatprep.subr.bf16.mxu0 0
      %802 = vmatpush1.bf16.msra.mxu0 0
      %803 = vmatprep.subr.bf16.mxu0 0
      %804 = vmatpush1.bf16.msra.mxu0 0
      %805 = vmatprep.subr.bf16.mxu0 0
      %806 = vmatpush1.bf16.msra.mxu0 0
      %807 = vmatprep.subr.bf16.mxu0 0
      %808 = vmatpush1.bf16.msra.mxu0 0
      %809 = vmatprep.subr.bf16.mxu0 0
      %810 = vmatpush1.bf16.msra.mxu0 0
      %811 = vmatprep.subr.bf16.mxu0 0
      %812 = vmatpush1.bf16.msra.mxu0 0
      %813 = vmatprep.subr.bf16.mxu0 0
      %814 = vmatpush1.bf16.msra.mxu0 0
      %815 = vmatprep.subr.bf16.mxu0 0
      %816 = vmatpush1.bf16.msra.mxu0 0
      %817 = vmatprep.subr.bf16.mxu0 0
      %818 = vmatpush1.bf16.msra.mxu0 0
      %819 = vmatprep.subr.bf16.mxu0 0
      %820 = vmatpush1.bf16.msra.mxu0 0
      %821 = vmatprep.subr.bf16.mxu0 0
      %822 = vmatpush1.bf16.msra.mxu0 0
      %823 = vmatprep.subr.bf16.mxu0 0
      %824 = vmatpush1.bf16.msra.mxu0 0
      %825 = vmatprep.subr.bf16.mxu0 0
      %826 = vmatpush1.bf16.msra.mxu0 0
      %827 = vmatprep.subr.bf16.mxu0 0
      %828 = vmatpush1.bf16.msra.mxu0 0
      %829 = vmatprep.mubr.bf16.mxu0 0
      %830 = vmatmul.mubr.bf16.gmra.mrb[0].mxu0 %v792
      %v831 = vpop.f32.mrb[0].mxu0
      %v832 = vadd.f32 %v777, %v831
      %v833 = vpop.f32.mrb[0].mxu0
      %v834 = vpop.f32.mrb[0].mxu0
      %v835 = vadd.f32 %v777, %v834
      %v836 = vpop.f32.mrb[0].mxu0
      %837 = vmatprep.mubr.bf16.mxu0 0
      %838 = vmatmul.mubr.bf16.gmra.mrb[0].mxu0 %v795
      %v839 = vpop.f32.mrb[0].mxu0
      %v840 = vadd.f32 %v777, %v839
      %v841 = vpop.f32.mrb[0].mxu0
      %v842 = vpop.f32.mrb[0].mxu0
      %v843 = vpop.f32.mrb[0].mxu0
      %844 = vdwg.mxu0
      %v845 = vxor.u32 %v832, 2147483648
      %v846 = vxor.u32 %v835, 2147483648
      %v847 = vxor.u32 %v840, 2147483648
      %v848 = vmul.f32 %v845, 1.442695
      %v849 = vpow.pop %v848
      %v850 = vmul.f32 %v846, 1.442695
      %v851 = vpow.pop %v850
      %v852 = vmul.f32 %v847, 1.442695
      %v853 = vpow.pop %v852
      %v854 = vadd.f32 %v849, 1.0
      %v855 = vadd.f32 %v851, 1.0
      %v856 = vadd.f32 %v853, 1.0
      %v857 = vrcp.pop %v854
      %v858 = vmul.f32 1.0, %v857
      %v859 = vrcp.pop %v855
      %v860 = vmul.f32 1.0, %v859
      %v861 = vrcp.pop %v856
      %v862 = vmul.f32 1.0, %v861
      %863 = vst [vmem:[%s390 + $0x10] sm:$0xff] %v858
      %864 = vst [vmem:[%s390 + $0x28] sm:$0xff] %v860
      %865 = vst [vmem:[%s390 + $0x40] sm:$0xff] %v862
      %s866 = smul.u32 3, %s22
      %p867 = scmp.lt.s32.totalorder %s866, 5
      %s868 = scalar_select %p867, %s866, 5
      %s869 = smul.addr %s868, 3
      %s870 = smul.addr %s869, 8
      %s871 = scalar_lea.vmem %s11, %s870
      // Predicated region
      $region65: #{hoi_forward.4} parent=63 // pred_check
        %p872 = pneg %p276
      $region66: #{hoi_forward.4} parent=63 // pred_check_branch
        %874 = sbr.rel (%p872) target = $region68
      $region67: #{hoi_forward.4} parent=63 // pred_region
        %s875 = smul.u32 3, %s22
      $region68: #{hoi_forward.4} parent=63 // pred_fallthru
        _
    $region64: #{hoi_forward.4} parent=5 // pred_fallthru
      _
    %p876 = scmp.le.s32.totalorder 2, %s17
    // Predicated region
    $region69: #{hoi_forward.4} parent=5 // pred_check
      %p877 = pneg %p876
    $region70: #{hoi_forward.4} parent=5 // pred_check_branch
      %879 = sbr.rel (%p877) target = $region72
    $region71: #{hoi_forward.4} parent=5 // pred_region
      %s880 = ssub.s32 %s17, 2
      // Predicated region
      $region73: #{hoi_forward.4} parent=71 // pred_check
        %p881 = pneg %p282
      $region74: #{hoi_forward.4} parent=71 // pred_check_branch
        %883 = sbr.rel (%p881) target = $region76
      $region75: #{hoi_forward.4} parent=71 // pred_region
        %s884 = smul.u32 3, %s23
        %p885 = scmp.lt.s32.totalorder %s884, 5
        %s886 = scalar_select %p885, %s884, 5
        %s887 = smul.addr %s886, 3
        %s888 = smul.addr %s887, 8
        %s889 = scalar_lea.vmem %s11, %s888
      $region76: #{hoi_forward.4} parent=71 // pred_fallthru
        _
    $region72: #{hoi_forward.4} parent=5 // pred_fallthru
      _
  $region6: #{hoi_forward.4} parent=0 // loop_footer
    %s21 = sadd.s32 1, %s17
  $region7: #{hoi_forward.4} parent=0 // loop_footer_branch
    %16 = sbr.rel target = $region3
  $region8: #{hoi_forward.4} parent=0 // loop_exit
    _

// kernel: hoi_forward.3
$region0: #{hoi_forward.3}
  #allocation0 [shape = 'u32[]', space=smem, size = 0x4, offset = 0x4, fixed_abs, tag = 'smem constant byte address 0x4 - core index']
  #allocation1 [shape = 'u32[144,128]{1,0:T(1,128)}', space=vmem, size = 0x12000, scoped, tag = 'internal scratch']
  %s0 = inlined_call_operand.vmem [shape: f32[2,4,256], index: 0, kind: input, shape index: {}]
  %s1 = inlined_call_operand.vmem [shape: bf16[32,4], index: 1, kind: input, shape index: {}]
  %s2 = inlined_call_operand.vmem [shape: f32[32,1], index: 2, kind: input, shape index: {}]
  %s3 = inlined_call_operand.vmem [shape: bf16[2,32,256], index: 3, kind: output, shape index: {}]
  %s4 = sld [smem:[#allocation0]]
  $region45: #{hoi_forward.3} parent=0
    _
  %s6 = ssub.s32 1, %s4
  %s7 = scalar_select 0, %s6, %s4
  loop: start=0, step=1, limit=4
  $region2: #{hoi_forward.3} parent=0 // loop_pre_header
    _
  $region3: #{hoi_forward.3} parent=0 // loop_header
    %s9 = sphi 0, %s13
    %p10 = scmp.ge.s32.totalorder %s9, 4
    %s16 = sphi 0, %s28
    %s17 = sphi 0, %s24
    %s18 = sphi 0, %s16
    %s19 = sphi 0, %s17
    %s20 = sphi 0, %s18
    %s21 = sphi 0, %s19
    %s33 = sphi 0, %s35
    %s36 = sphi 0, %s33
    %s37 = sphi 0, %s36
    %s53 = sphi 0, %s37
    %s57 = sphi 0, %s57
    %s59 = sphi 0, %s57
    %s60 = sphi 0, %s59
    %s74 = sphi 0, %s60
    %s78 = sphi 0, %s78
    %s80 = sphi 0, %s78
    %s81 = sphi 0, %s80
    %s95 = sphi 0, %s81
    %s103 = sphi 0, %s105
    %s106 = sphi 0, %s103
    %s107 = sphi 0, %s106
    %s123 = sphi 0, %s107
  $region4: #{hoi_forward.3} parent=0 // loop_header_branch
    %12 = sbr.rel (%p10) target = $region8
  $region5: #{hoi_forward.3} parent=0 // loop_body
    %s14 = ssub.s32 %s9, 1
    %s15 = ssub.s32 %s9, 2
    %s22 = sadd.s32 1, %s17
    %p23 = scmp.ge.s32.totalorder %s22, 1
    %s24 = scalar_select %p23, 0, %s22
    %s25 = sadd.s32 1, %s16
    %s26 = scalar_select %p23, %s25, %s16
    %p27 = scmp.ge.s32.totalorder %s26, 2
    %s28 = scalar_select %p27, 0, %s26
    %s29 = ssub.s32 %s16, %s28
    %s30 = ssub.s32 %s17, %s24
    %s31 = sor.u32 %s29, %s30
    %p32 = scmp.eq.s32.totalorder %s31, 0
    %s34 = sadd.s32 %s33, 1
    %s35 = scalar_select %p32, %s33, %s34
    %p38 = pneg %p32
    %p39 = scmp.eq.s32.totalorder %s9, 1
    %p40 = por %p38, %p39
    %p41 = scmp.ne.s32.totalorder %s33, %s36
    %p42 = scmp.eq.s32.totalorder %s9, 0
    %p43 = por %p41, %p42
    %p44 = scmp.ne.s32.totalorder %s33, %s36
    %p45 = scmp.eq.s32.totalorder %s14, 1
    %p46 = por %p44, %p45
    %p47 = scmp.ne.s32.totalorder %s36, %s37
    %p48 = scmp.eq.s32.totalorder %s14, 0
    %p49 = por %p47, %p48
    %p50 = scmp.ne.s32.totalorder %s36, %s37
    %p51 = scmp.eq.s32.totalorder %s15, 1
    %p52 = por %p50, %p51
    %p54 = scmp.ne.s32.totalorder %s37, %s53
    %p55 = scmp.eq.s32.totalorder %s15, 0
    %p56 = por %p54, %p55
    %s58 = sadd.s32 %s57, 1
    %p61 = scmp.eq.s32.totalorder %s9, 1
    %p62 = scmp.ne.s32.totalorder %s57, %s59
    %p63 = scmp.eq.s32.totalorder %s9, 0
    %p64 = por %p62, %p63
    %p65 = scmp.ne.s32.totalorder %s57, %s59
    %p66 = scmp.eq.s32.totalorder %s14, 1
    %p67 = por %p65, %p66
    %p68 = scmp.ne.s32.totalorder %s59, %s60
    %p69 = scmp.eq.s32.totalorder %s14, 0
    %p70 = por %p68, %p69
    %p71 = scmp.ne.s32.totalorder %s59, %s60
    %p72 = scmp.eq.s32.totalorder %s15, 1
    %p73 = por %p71, %p72
    %p75 = scmp.ne.s32.totalorder %s60, %s74
    %p76 = scmp.eq.s32.totalorder %s15, 0
    %p77 = por %p75, %p76
    %s79 = sadd.s32 %s78, 1
    %p82 = scmp.eq.s32.totalorder %s9, 1
    %p83 = scmp.ne.s32.totalorder %s78, %s80
    %p84 = scmp.eq.s32.totalorder %s9, 0
    %p85 = por %p83, %p84
    %p86 = scmp.ne.s32.totalorder %s78, %s80
    %p87 = scmp.eq.s32.totalorder %s14, 1
    %p88 = por %p86, %p87
    %p89 = scmp.ne.s32.totalorder %s80, %s81
    %p90 = scmp.eq.s32.totalorder %s14, 0
    %p91 = por %p89, %p90
    %p92 = scmp.ne.s32.totalorder %s80, %s81
    %p93 = scmp.eq.s32.totalorder %s15, 1
    %p94 = por %p92, %p93
    %p96 = scmp.ne.s32.totalorder %s81, %s95
    %p97 = scmp.eq.s32.totalorder %s15, 0
    %p98 = por %p96, %p97
    %s99 = ssub.s32 %s16, %s28
    %s100 = ssub.s32 %s17, %s24
    %s101 = sor.u32 %s99, %s100
    %p102 = scmp.eq.s32.totalorder %s101, 0
    %s104 = sadd.s32 %s103, 1
    %s105 = scalar_select %p102, %s103, %s104
    %p108 = pneg %p102
    %p109 = scmp.eq.s32.totalorder %s9, 1
    %p110 = por %p108, %p109
    %p111 = scmp.ne.s32.totalorder %s103, %s106
    %p112 = scmp.eq.s32.totalorder %s9, 0
    %p113 = por %p111, %p112
    %p114 = scmp.ne.s32.totalorder %s103, %s106
    %p115 = scmp.eq.s32.totalorder %s14, 1
    %p116 = por %p114, %p115
    %p117 = scmp.ne.s32.totalorder %s106, %s107
    %p118 = scmp.eq.s32.totalorder %s14, 0
    %p119 = por %p117, %p118
    %p120 = scmp.ne.s32.totalorder %s106, %s107
    %p121 = scmp.eq.s32.totalorder %s15, 1
    %p122 = por %p120, %p121
    %p124 = scmp.ne.s32.totalorder %s107, %s123
    %p125 = scmp.eq.s32.totalorder %s15, 0
    %p126 = por %p124, %p125
    %p127 = scmp.le.s32.totalorder 1, %s9
    %p128 = scmp.lt.s32.totalorder %s9, 3
    %p129 = pnand %p127, %p128
    %p130 = pneg %p129
    // Predicated region
    $region9: #{hoi_forward.3} parent=5 // pred_check
      _
    $region10: #{hoi_forward.3} parent=5 // pred_check_branch
      %132 = sbr.rel (%p129) target = $region12
    $region11: #{hoi_forward.3} parent=5 // pred_region
      %s133 = ssub.s32 %s9, 1
      // Predicated region
      $region13: #{hoi_forward.3} parent=11 // pred_check
        %p134 = pneg %p70
      $region14: #{hoi_forward.3} parent=11 // pred_check_branch
        %136 = sbr.rel (%p134) target = $region16
      $region15: #{hoi_forward.3} parent=11 // pred_region
        _
      $region16: #{hoi_forward.3} parent=11 // pred_fallthru
        _
      // Predicated region
      $region17: #{hoi_forward.3} parent=11 // pred_check
        %p137 = pneg %p91
      $region18: #{hoi_forward.3} parent=11 // pred_check_branch
        %139 = sbr.rel (%p137) target = $region20
      $region19: #{hoi_forward.3} parent=11 // pred_region
        _
      $region20: #{hoi_forward.3} parent=11 // pred_fallthru
        _
    $region12: #{hoi_forward.3} parent=5 // pred_fallthru
      _
    %p140 = scmp.lt.s32.totalorder %s9, 2
    // Predicated region
    $region21: #{hoi_forward.3} parent=5 // pred_check
      %p141 = pneg %p140
    $region22: #{hoi_forward.3} parent=5 // pred_check_branch
      %143 = sbr.rel (%p141) target = $region24
    $region23: #{hoi_forward.3} parent=5 // pred_region
      // Predicated region
      $region25: #{hoi_forward.3} parent=23 // pred_check
        %p144 = pneg %p43
      $region26: #{hoi_forward.3} parent=23 // pred_check_branch
        %146 = sbr.rel (%p144) target = $region28
      $region27: #{hoi_forward.3} parent=23 // pred_region
        %s147 = smul.u32 2, %s17
        %p148 = scmp.lt.s32.totalorder %s16, 1
        %s149 = scalar_select %p148, %s16, 1
        %p150 = scmp.lt.s32.totalorder %s147, 1
        %s151 = scalar_select %p150, %s147, 1
        %s152 = smul.addr %s149, 2
        %s153 = sadd.s32 %s151, %s152
        %s154 = smul.addr %s153, 4
        %s155 = scalar_lea.vmem %s0, %s154
        %s156 = smul.u32 2, %s17
      $region28: #{hoi_forward.3} parent=23 // pred_fallthru
        _
    $region24: #{hoi_forward.3} parent=5 // pred_fallthru
      _
    %p157 = scmp.le.s32.totalorder 1, %s9
    %p158 = scmp.lt.s32.totalorder %s9, 3
    %p159 = pnand %p157, %p158
    %p160 = pneg %p159
    // Predicated region
    $region29: #{hoi_forward.3} parent=5 // pred_check
      _
    $region30: #{hoi_forward.3} parent=5 // pred_check_branch
      %162 = sbr.rel (%p159) target = $region32
    $region31: #{hoi_forward.3} parent=5 // pred_region
      %s163 = ssub.s32 %s9, 1
      %s164 = smul.u32 2, %s19
      %p165 = scmp.lt.s32.totalorder %s18, 1
      %s166 = scalar_select %p165, %s18, 1
      %p167 = scmp.lt.s32.totalorder %s164, 1
      %s168 = scalar_select %p167, %s164, 1
      %s169 = smul.addr %s166, 2
      %s170 = sadd.s32 %s168, %s169
      %s171 = smul.addr %s170, 4
      %s172 = scalar_lea.vmem %s0, %s171
      %p173 = pneg %p49
      %p174 = pneg %p46
      %p175 = pneg %p70
      %p176 = pneg %p67
      %p177 = pneg %p91
      %p178 = pneg %p88
      %p179 = pneg %p119
      %p180 = pneg %p116
      %s181 = smul.u32 2, %s19
      %p182 = scmp.lt.s32.totalorder %s18, 1
      %s183 = scalar_select %p182, %s18, 1
      %p184 = scmp.lt.s32.totalorder %s181, 1
      %s185 = scalar_select %p184, %s181, 1
      %s186 = smul.addr %s183, 8
      %s187 = sadd.s32 %s185, %s186
      %s188 = smul.addr %s187, 4
      %s189 = scalar_lea.vmem %s3, %s188
      %s190 = smul.u32 2, %s19
      %p191 = scmp.lt.s32.totalorder %s18, 1
      %s192 = scalar_select %p191, %s18, 1
      %p193 = scmp.lt.s32.totalorder %s190, 1
      %s194 = scalar_select %p193, %s190, 1
      %s195 = smul.addr %s192, 2
      %s196 = sadd.s32 %s194, %s195
      %s197 = smul.addr %s196, 4
      %s198 = scalar_lea.vmem %s0, %s197
      %s199 = smul.u32 2, %s19
      %s200 = smul.u32 2, %s19
      %p201 = scmp.lt.s32.totalorder %s18, 1
      %s202 = scalar_select %p201, %s18, 1
      %p203 = scmp.lt.s32.totalorder %s200, 1
      %s204 = scalar_select %p203, %s200, 1
      %s205 = smul.addr %s202, 8
      %s206 = sadd.s32 %s204, %s205
      %s207 = smul.addr %s206, 4
      %s208 = scalar_lea.vmem %s3, %s207
      %s209 = smul.u32 2, %s19
      %v211 = vld [vmem:[%s1] sm:$0xf]
      %v212 = vld [vmem:[%s1 + $0x4] sm:$0xf]
      %v213 = vld [vmem:[%s1 + $0x8] sm:$0xf]
      %v214 = vld [vmem:[%s1 + $0xc] sm:$0xf]
      %v215 = vld [vmem:[%s198] sm:$0xff]
      %v217 = vcombine.high %v215, %v215
      %v219 = vpack.c.bf16 %v215, %v215
      %v220 = vpack.c.bf16 %v217, %v217
      %v221 = vld [vmem:[%s2] sm:$0xff]
      %v222 = vld [vmem:[%s2 + $0x8] sm:$0xff]
      %v223 = vld [vmem:[%s2 + $0x10] sm:$0xff]
      %v224 = vld [vmem:[%s2 + $0x18] sm:$0xff]
      %226 = vset.pattern.permute.xlu0 0
      %227 = vperm.xlu0 %226, %v221
      %v228 = vpop.permute.xlu0 %227
      %231 = vset.pattern.permute.xlu0 0
      %232 = vperm.xlu0 %231, %v222
      %v233 = vpop.permute.xlu0 %232
      %236 = vset.pattern.permute.xlu0 0
      %237 = vperm.xlu0 %236, %v223
      %v238 = vpop.permute.xlu0 %237
      %241 = vset.pattern.permute.xlu0 0
      %242 = vperm.xlu0 %241, %v224
      %v243 = vpop.permute.xlu0 %242
      %v249 = vunpack.c.l.b16 %v211
      %v250 = vunpack.c.l.b16 %v212
      %v251 = vunpack.c.l.b16 %v213
      %v252 = vunpack.c.l.b16 %v214
      %v253 = vpack.c.b16 %v250, %v249
      %v254 = vpack.c.b16 %v252, %v251
      %vm255 = vcmask 31744
      %v257 = vsel %vm255, %v253, 0
      %v260 = vsel %vm255, %v254, 0
      %vm262 = vcmask 1041408
      %v264 = vsel %vm262, %v219, 0
      %v267 = vsel %vm262, %v220, 0
      %269 = vmatprep.subr.bf16.mxu0 %v267
      %270 = vmatpush1.bf16.msra.mxu0 %v264
      %271 = vmatprep.subr.bf16.mxu0 0
      %272 = vmatpush1.bf16.msra.mxu0 0
      %273 = vmatprep.subr.bf16.mxu0 0
      %274 = vmatpush1.bf16.msra.mxu0 0
      %275 = vmatprep.subr.bf16.mxu0 0
      %276 = vmatpush1.bf16.msra.mxu0 0
      %277 = vmatprep.subr.bf16.mxu0 0
      %278 = vmatpush1.bf16.msra.mxu0 0
      %279 = vmatprep.subr.bf16.mxu0 0
      %280 = vmatpush1.bf16.msra.mxu0 0
      %281 = vmatprep.subr.bf16.mxu0 0
      %282 = vmatpush1.bf16.msra.mxu0 0
      %283 = vmatprep.subr.bf16.mxu0 0
      %284 = vmatpush1.bf16.msra.mxu0 0
      %285 = vmatprep.subr.bf16.mxu0 0
      %286 = vmatpush1.bf16.msra.mxu0 0
      %287 = vmatprep.subr.bf16.mxu0 0
      %288 = vmatpush1.bf16.msra.mxu0 0
      %289 = vmatprep.subr.bf16.mxu0 0
      %290 = vmatpush1.bf16.msra.mxu0 0
      %291 = vmatprep.subr.bf16.mxu0 0
      %292 = vmatpush1.bf16.msra.mxu0 0
      %293 = vmatprep.subr.bf16.mxu0 0
      %294 = vmatpush1.bf16.msra.mxu0 0
      %295 = vmatprep.subr.bf16.mxu0 0
      %296 = vmatpush1.bf16.msra.mxu0 0
      %297 = vmatprep.subr.bf16.mxu0 0
      %298 = vmatpush1.bf16.msra.mxu0 0
      %299 = vmatprep.subr.bf16.mxu0 0
      %300 = vmatpush1.bf16.msra.mxu0 0
      %301 = vmatprep.mubr.bf16.mxu0 0
      %302 = vmatmul.mubr.bf16.gmra.mrb[0].mxu0 %v257
      %v303 = vpop.f32.mrb[0].mxu0
      %v304 = vadd.f32 %v228, %v303
      %v305 = vpop.f32.mrb[0].mxu0
      %v306 = vadd.f32 %v228, %v305
      %v307 = vpop.f32.mrb[0].mxu0
      %v308 = vadd.f32 %v233, %v307
      %v309 = vpop.f32.mrb[0].mxu0
      %v310 = vadd.f32 %v233, %v309
      %311 = vmatprep.mubr.bf16.mxu0 0
      %312 = vmatmul.mubr.bf16.gmra.mrb[0].mxu0 %v260
      %v313 = vpop.f32.mrb[0].mxu0
      %v314 = vadd.f32 %v238, %v313
      %v315 = vpop.f32.mrb[0].mxu0
      %v316 = vadd.f32 %v238, %v315
      %v317 = vpop.f32.mrb[0].mxu0
      %v318 = vadd.f32 %v243, %v317
      %v319 = vpop.f32.mrb[0].mxu0
      %v320 = vadd.f32 %v243, %v319
      %321 = vdwg.mxu0
      %v322 = vpack.c.bf16 %v308, %v304
      %v323 = vpack.c.bf16 %v310, %v306
      %v324 = vpack.c.bf16 %v318, %v314
      %v325 = vpack.c.bf16 %v320, %v316
      %v330 = vunpack.c.l.b16 %v322
      %v331 = vunpack.c.l.b16 %v323
      %v332 = vunpack.c.h.b16 %v322
      %v333 = vunpack.c.h.b16 %v323
      %v334 = vunpack.c.l.b16 %v324
      %v335 = vunpack.c.l.b16 %v325
      %v336 = vunpack.c.h.b16 %v324
      %v337 = vunpack.c.h.b16 %v325
      %v338 = vpack.c.b16 %v331, %v330
      %v339 = vpack.c.b16 %v333, %v332
      %v340 = vpack.c.b16 %v335, %v334
      %v341 = vpack.c.b16 %v337, %v336
      %346 = vst [vmem:[%s208] sm:$0xff] %v338
      %347 = vst [vmem:[%s208 + $0x8] sm:$0xff] %v339
      %348 = vst [vmem:[%s208 + $0x10] sm:$0xff] %v340
      %349 = vst [vmem:[%s208 + $0x18] sm:$0xff] %v341
      %s350 = smul.u32 2, %s19
      %p351 = scmp.lt.s32.totalorder %s18, 1
      %s352 = scalar_select %p351, %s18, 1
      %p353 = scmp.lt.s32.totalorder %s350, 1
      %s354 = scalar_select %p353, %s350, 1
      %s355 = smul.addr %s352, 8
      %s356 = sadd.s32 %s354, %s355
      %s357 = smul.addr %s356, 4
      %s358 = scalar_lea.vmem %s3, %s357
      // Predicated region
      $region33: #{hoi_forward.3} parent=31 // pred_check
        %p359 = pneg %p116
      $region34: #{hoi_forward.3} parent=31 // pred_check_branch
        %361 = sbr.rel (%p359) target = $region36
      $region35: #{hoi_forward.3} parent=31 // pred_region
        %s362 = smul.u32 2, %s19
      $region36: #{hoi_forward.3} parent=31 // pred_fallthru
        _
    $region32: #{hoi_forward.3} parent=5 // pred_fallthru
      _
    %p363 = scmp.le.s32.totalorder 2, %s9
    // Predicated region
    $region37: #{hoi_forward.3} parent=5 // pred_check
      %p364 = pneg %p363
    $region38: #{hoi_forward.3} parent=5 // pred_check_branch
      %366 = sbr.rel (%p364) target = $region40
    $region39: #{hoi_forward.3} parent=5 // pred_region
      %s367 = ssub.s32 %s9, 2
      // Predicated region
      $region41: #{hoi_forward.3} parent=39 // pred_check
        %p368 = pneg %p122
      $region42: #{hoi_forward.3} parent=39 // pred_check_branch
        %370 = sbr.rel (%p368) target = $region44
      $region43: #{hoi_forward.3} parent=39 // pred_region
        %s371 = smul.u32 2, %s21
        %p372 = scmp.lt.s32.totalorder %s20, 1
        %s373 = scalar_select %p372, %s20, 1
        %p374 = scmp.lt.s32.totalorder %s371, 1
        %s375 = scalar_select %p374, %s371, 1
        %s376 = smul.addr %s373, 8
        %s377 = sadd.s32 %s375, %s376
        %s378 = smul.addr %s377, 4
        %s379 = scalar_lea.vmem %s3, %s378
      $region44: #{hoi_forward.3} parent=39 // pred_fallthru
        _
    $region40: #{hoi_forward.3} parent=5 // pred_fallthru
      _
  $region6: #{hoi_forward.3} parent=0 // loop_footer
    %s13 = sadd.s32 1, %s9
  $region7: #{hoi_forward.3} parent=0 // loop_footer_branch
    %8 = sbr.rel target = $region3
  $region8: #{hoi_forward.3} parent=0 // loop_exit
    _

// kernel: hoi_forward.5
$region0: #{hoi_forward.5}
  #allocation0 [shape = 'u32[]', space=smem, size = 0x4, offset = 0x4, fixed_abs, tag = 'smem constant byte address 0x4 - core index']
  #allocation1 [shape = 'u32[144,128]{1,0:T(1,128)}', space=vmem, size = 0x12000, scoped, tag = 'internal scratch']
  %s0 = inlined_call_operand.vmem [shape: f32[48,32], index: 0, kind: input, shape index: {}]
  %s1 = inlined_call_operand.vmem [shape: bf16[32,768], index: 1, kind: input, shape index: {}]
  %s2 = inlined_call_operand.vmem [shape: f32[1,768], index: 2, kind: input, shape index: {}]
  %s3 = inlined_call_operand.vmem [shape: bf16[768,128], index: 3, kind: input, shape index: {}]
  %s4 = inlined_call_operand.vmem [shape: f32[48,128], index: 4, kind: output, shape index: {}]
  %s5 = sld [smem:[#allocation0]]
  $region49: #{hoi_forward.5} parent=0
    _
  %s7 = ssub.s32 1, %s5
  %s8 = scalar_select 0, %s7, %s5
  loop: start=0, step=1, limit=4
  $region2: #{hoi_forward.5} parent=0 // loop_pre_header
    _
  $region3: #{hoi_forward.5} parent=0 // loop_header
    %s10 = sphi 0, %s14
    %p11 = scmp.ge.s32.totalorder %s10, 4
    %s20 = sphi 0, %s22
    %s23 = sphi 0, %s20
    %s24 = sphi 0, %s23
    %s40 = sphi 0, %s24
    %s44 = sphi 0, %s44
    %s46 = sphi 0, %s44
    %s47 = sphi 0, %s46
    %s61 = sphi 0, %s47
    %s65 = sphi 0, %s65
    %s67 = sphi 0, %s65
    %s68 = sphi 0, %s67
    %s82 = sphi 0, %s68
    %s86 = sphi 0, %s86
    %s88 = sphi 0, %s86
    %s89 = sphi 0, %s88
    %s103 = sphi 0, %s89
    %s109 = sphi 0, %s111
    %s112 = sphi 0, %s109
    %s113 = sphi 0, %s112
    %s129 = sphi 0, %s113
  $region4: #{hoi_forward.5} parent=0 // loop_header_branch
    %13 = sbr.rel (%p11) target = $region8
  $region5: #{hoi_forward.5} parent=0 // loop_body
    %s15 = ssub.s32 %s10, 1
    %s16 = ssub.s32 %s10, 2
    %s17 = sadd.s32 %s10, 1
    %s18 = ssub.s32 %s10, %s17
    %p19 = scmp.eq.s32.totalorder %s18, 0
    %s21 = sadd.s32 %s20, 1
    %s22 = scalar_select %p19, %s20, %s21
    %p25 = pneg %p19
    %p26 = scmp.eq.s32.totalorder %s10, 1
    %p27 = por %p25, %p26
    %p28 = scmp.ne.s32.totalorder %s20, %s23
    %p29 = scmp.eq.s32.totalorder %s10, 0
    %p30 = por %p28, %p29
    %p31 = scmp.ne.s32.totalorder %s20, %s23
    %p32 = scmp.eq.s32.totalorder %s15, 1
    %p33 = por %p31, %p32
    %p34 = scmp.ne.s32.totalorder %s23, %s24
    %p35 = scmp.eq.s32.totalorder %s15, 0
    %p36 = por %p34, %p35
    %p37 = scmp.ne.s32.totalorder %s23, %s24
    %p38 = scmp.eq.s32.totalorder %s16, 1
    %p39 = por %p37, %p38
    %p41 = scmp.ne.s32.totalorder %s24, %s40
    %p42 = scmp.eq.s32.totalorder %s16, 0
    %p43 = por %p41, %p42
    %s45 = sadd.s32 %s44, 1
    %p48 = scmp.eq.s32.totalorder %s10, 1
    %p49 = scmp.ne.s32.totalorder %s44, %s46
    %p50 = scmp.eq.s32.totalorder %s10, 0
    %p51 = por %p49, %p50
    %p52 = scmp.ne.s32.totalorder %s44, %s46
    %p53 = scmp.eq.s32.totalorder %s15, 1
    %p54 = por %p52, %p53
    %p55 = scmp.ne.s32.totalorder %s46, %s47
    %p56 = scmp.eq.s32.totalorder %s15, 0
    %p57 = por %p55, %p56
    %p58 = scmp.ne.s32.totalorder %s46, %s47
    %p59 = scmp.eq.s32.totalorder %s16, 1
    %p60 = por %p58, %p59
    %p62 = scmp.ne.s32.totalorder %s47, %s61
    %p63 = scmp.eq.s32.totalorder %s16, 0
    %p64 = por %p62, %p63
    %s66 = sadd.s32 %s65, 1
    %p69 = scmp.eq.s32.totalorder %s10, 1
    %p70 = scmp.ne.s32.totalorder %s65, %s67
    %p71 = scmp.eq.s32.totalorder %s10, 0
    %p72 = por %p70, %p71
    %p73 = scmp.ne.s32.totalorder %s65, %s67
    %p74 = scmp.eq.s32.totalorder %s15, 1
    %p75 = por %p73, %p74
    %p76 = scmp.ne.s32.totalorder %s67, %s68
    %p77 = scmp.eq.s32.totalorder %s15, 0
    %p78 = por %p76, %p77
    %p79 = scmp.ne.s32.totalorder %s67, %s68
    %p80 = scmp.eq.s32.totalorder %s16, 1
    %p81 = por %p79, %p80
    %p83 = scmp.ne.s32.totalorder %s68, %s82
    %p84 = scmp.eq.s32.totalorder %s16, 0
    %p85 = por %p83, %p84
    %s87 = sadd.s32 %s86, 1
    %p90 = scmp.eq.s32.totalorder %s10, 1
    %p91 = scmp.ne.s32.totalorder %s86, %s88
    %p92 = scmp.eq.s32.totalorder %s10, 0
    %p93 = por %p91, %p92
    %p94 = scmp.ne.s32.totalorder %s86, %s88
    %p95 = scmp.eq.s32.totalorder %s15, 1
    %p96 = por %p94, %p95
    %p97 = scmp.ne.s32.totalorder %s88, %s89
    %p98 = scmp.eq.s32.totalorder %s15, 0
    %p99 = por %p97, %p98
    %p100 = scmp.ne.s32.totalorder %s88, %s89
    %p101 = scmp.eq.s32.totalorder %s16, 1
    %p102 = por %p100, %p101
    %p104 = scmp.ne.s32.totalorder %s89, %s103
    %p105 = scmp.eq.s32.totalorder %s16, 0
    %p106 = por %p104, %p105
    %s107 = ssub.s32 %s10, %s17
    %p108 = scmp.eq.s32.totalorder %s107, 0
    %s110 = sadd.s32 %s109, 1
    %s111 = scalar_select %p108, %s109, %s110
    %p114 = pneg %p108
    %p115 = scmp.eq.s32.totalorder %s10, 1
    %p116 = por %p114, %p115
    %p117 = scmp.ne.s32.totalorder %s109, %s112
    %p118 = scmp.eq.s32.totalorder %s10, 0
    %p119 = por %p117, %p118
    %p120 = scmp.ne.s32.totalorder %s109, %s112
    %p121 = scmp.eq.s32.totalorder %s15, 1
    %p122 = por %p120, %p121
    %p123 = scmp.ne.s32.totalorder %s112, %s113
    %p124 = scmp.eq.s32.totalorder %s15, 0
    %p125 = por %p123, %p124
    %p126 = scmp.ne.s32.totalorder %s112, %s113
    %p127 = scmp.eq.s32.totalorder %s16, 1
    %p128 = por %p126, %p127
    %p130 = scmp.ne.s32.totalorder %s113, %s129
    %p131 = scmp.eq.s32.totalorder %s16, 0
    %p132 = por %p130, %p131
    %p133 = scmp.le.s32.totalorder 1, %s10
    %p134 = scmp.lt.s32.totalorder %s10, 3
    %p135 = pnand %p133, %p134
    %p136 = pneg %p135
    // Predicated region
    $region9: #{hoi_forward.5} parent=5 // pred_check
      _
    $region10: #{hoi_forward.5} parent=5 // pred_check_branch
      %138 = sbr.rel (%p135) target = $region12
    $region11: #{hoi_forward.5} parent=5 // pred_region
      %s139 = ssub.s32 %s10, 1
      // Predicated region
      $region13: #{hoi_forward.5} parent=11 // pred_check
        %p140 = pneg %p57
      $region14: #{hoi_forward.5} parent=11 // pred_check_branch
        %142 = sbr.rel (%p140) target = $region16
      $region15: #{hoi_forward.5} parent=11 // pred_region
        _
      $region16: #{hoi_forward.5} parent=11 // pred_fallthru
        _
      // Predicated region
      $region17: #{hoi_forward.5} parent=11 // pred_check
        %p143 = pneg %p78
      $region18: #{hoi_forward.5} parent=11 // pred_check_branch
        %145 = sbr.rel (%p143) target = $region20
      $region19: #{hoi_forward.5} parent=11 // pred_region
        _
      $region20: #{hoi_forward.5} parent=11 // pred_fallthru
        _
      // Predicated region
      $region21: #{hoi_forward.5} parent=11 // pred_check
        %p146 = pneg %p99
      $region22: #{hoi_forward.5} parent=11 // pred_check_branch
        %148 = sbr.rel (%p146) target = $region24
      $region23: #{hoi_forward.5} parent=11 // pred_region
        _
      $region24: #{hoi_forward.5} parent=11 // pred_fallthru
        _
    $region12: #{hoi_forward.5} parent=5 // pred_fallthru
      _
    %p149 = scmp.lt.s32.totalorder %s10, 2
    // Predicated region
    $region25: #{hoi_forward.5} parent=5 // pred_check
      %p150 = pneg %p149
    $region26: #{hoi_forward.5} parent=5 // pred_check_branch
      %152 = sbr.rel (%p150) target = $region28
    $region27: #{hoi_forward.5} parent=5 // pred_region
      // Predicated region
      $region29: #{hoi_forward.5} parent=27 // pred_check
        %p153 = pneg %p30
      $region30: #{hoi_forward.5} parent=27 // pred_check_branch
        %155 = sbr.rel (%p153) target = $region32
      $region31: #{hoi_forward.5} parent=27 // pred_region
        %s156 = smul.u32 3, %s10
        %p157 = scmp.lt.s32.totalorder %s156, 5
        %s158 = scalar_select %p157, %s156, 5
        %s159 = smul.addr %s158, 8
        %s160 = scalar_lea.vmem %s0, %s159
        %s161 = smul.u32 3, %s10
      $region32: #{hoi_forward.5} parent=27 // pred_fallthru
        _
    $region28: #{hoi_forward.5} parent=5 // pred_fallthru
      _
    %p162 = scmp.le.s32.totalorder 1, %s10
    %p163 = scmp.lt.s32.totalorder %s10, 3
    %p164 = pnand %p162, %p163
    %p165 = pneg %p164
    // Predicated region
    $region33: #{hoi_forward.5} parent=5 // pred_check
      _
    $region34: #{hoi_forward.5} parent=5 // pred_check_branch
      %167 = sbr.rel (%p164) target = $region36
    $region35: #{hoi_forward.5} parent=5 // pred_region
      %s168 = ssub.s32 %s10, 1
      %s169 = smul.u32 3, %s15
      %p170 = scmp.lt.s32.totalorder %s169, 5
      %s171 = scalar_select %p170, %s169, 5
      %s172 = smul.addr %s171, 8
      %s173 = scalar_lea.vmem %s0, %s172
      %p174 = pneg %p36
      %p175 = pneg %p33
      %p176 = pneg %p57
      %p177 = pneg %p54
      %p178 = pneg %p78
      %p179 = pneg %p75
      %p180 = pneg %p99
      %p181 = pneg %p96
      %p182 = pneg %p125
      %p183 = pneg %p122
      %s184 = smul.u32 3, %s15
      %p185 = scmp.lt.s32.totalorder %s184, 5
      %s186 = scalar_select %p185, %s184, 5
      %s187 = smul.addr %s186, 8
      %s188 = scalar_lea.vmem %s4, %s187
      %s189 = smul.u32 3, %s15
      %p190 = scmp.lt.s32.totalorder %s189, 5
      %s191 = scalar_select %p190, %s189, 5
      %s192 = smul.addr %s191, 8
      %s193 = scalar_lea.vmem %s0, %s192
      %s194 = smul.u32 3, %s15
      %s195 = smul.u32 3, %s15
      %p196 = scmp.lt.s32.totalorder %s195, 5
      %s197 = scalar_select %p196, %s195, 5
      %s198 = smul.addr %s197, 8
      %s199 = scalar_lea.vmem %s4, %s198
      %s200 = smul.u32 3, %s15
      %v202 = vld [vmem:[%s193] sm:$0xff]
      %v203 = vld [vmem:[%s193 + $0x8] sm:$0xff]
      %v204 = vld [vmem:[%s193 + $0x10] sm:$0xff]
      %v205 = vpack.c.bf16 %v203, %v202
      %v206 = vpack.c.bf16 %v204, %v204
      %v207 = vld [vmem:[%s1] sm:$0xff]
      %v208 = vld [vmem:[%s1 + $0x8] sm:$0xff]
      %v209 = vld [vmem:[%s1 + $0x10] sm:$0xff]
      %v210 = vld [vmem:[%s1 + $0x18] sm:$0xff]
      %v211 = vld [vmem:[%s1 + $0x20] sm:$0xff]
      %v212 = vld [vmem:[%s1 + $0x28] sm:$0xff]
      %v213 = vld [vmem:[%s1 + $0x30] sm:$0xff]
      %v214 = vld [vmem:[%s1 + $0x38] sm:$0xff]
      %v215 = vld [vmem:[%s1 + $0x40] sm:$0xff]
      %v216 = vld [vmem:[%s1 + $0x48] sm:$0xff]
      %v217 = vld [vmem:[%s1 + $0x50] sm:$0xff]
      %v218 = vld [vmem:[%s1 + $0x58] sm:$0xff]
      %v219 = vld [vmem:[%s2] sm:$0x3f]
      %v221 = vlaneseq
      %v222 = vshrl.u32 %v221, 7
      %v223 = vsub.s32 0, %v222
      %v224 = vrot.slane %v219, %v223
      %v225 = vlaneseq
      %v226 = vshrl.u32 %v225, 7
      %v227 = vsub.s32 1, %v226
      %v228 = vrot.slane %v219, %v227
      %v229 = vlaneseq
      %v230 = vshrl.u32 %v229, 7
      %v231 = vsub.s32 2, %v230
      %v232 = vrot.slane %v219, %v231
      %v233 = vlaneseq
      %v234 = vshrl.u32 %v233, 7
      %v235 = vsub.s32 3, %v234
      %v236 = vrot.slane %v219, %v235
      %v237 = vlaneseq
      %v238 = vshrl.u32 %v237, 7
      %v239 = vsub.s32 4, %v238
      %v240 = vrot.slane %v219, %v239
      %v241 = vlaneseq
      %v242 = vshrl.u32 %v241, 7
      %v243 = vsub.s32 5, %v242
      %v244 = vrot.slane %v219, %v243
      %v263 = vunpack.c.l.b16 %v207
      %v264 = vunpack.c.h.b16 %v207
      %v265 = vunpack.c.l.b16 %v208
      %v266 = vunpack.c.h.b16 %v208
      %v267 = vunpack.c.l.b16 %v209
      %v268 = vunpack.c.h.b16 %v209
      %v269 = vunpack.c.l.b16 %v210
      %v270 = vunpack.c.h.b16 %v210
      %v271 = vunpack.c.l.b16 %v211
      %v272 = vunpack.c.h.b16 %v211
      %v273 = vunpack.c.l.b16 %v212
      %v274 = vunpack.c.h.b16 %v212
      %v275 = vunpack.c.l.b16 %v213
      %v276 = vunpack.c.h.b16 %v213
      %v277 = vunpack.c.l.b16 %v214
      %v278 = vunpack.c.h.b16 %v214
      %v279 = vunpack.c.l.b16 %v215
      %v280 = vunpack.c.h.b16 %v215
      %v281 = vunpack.c.l.b16 %v216
      %v282 = vunpack.c.h.b16 %v216
      %v283 = vunpack.c.l.b16 %v217
      %v284 = vunpack.c.h.b16 %v217
      %v285 = vunpack.c.l.b16 %v218
      %v286 = vunpack.c.h.b16 %v218
      %v287 = vpack.c.b16 %v269, %v263
      %v288 = vpack.c.b16 %v270, %v264
      %v289 = vpack.c.b16 %v271, %v265
      %v290 = vpack.c.b16 %v272, %v266
      %v291 = vpack.c.b16 %v273, %v267
      %v292 = vpack.c.b16 %v274, %v268
      %v293 = vpack.c.b16 %v281, %v275
      %v294 = vpack.c.b16 %v282, %v276
      %v295 = vpack.c.b16 %v283, %v277
      %v296 = vpack.c.b16 %v284, %v278
      %v297 = vpack.c.b16 %v285, %v279
      %v298 = vpack.c.b16 %v286, %v280
      %vm311 = vcmask 261120
      %v313 = vsel %vm311, %v205, 0
      %v316 = vsel %vm311, %v206, 0
      %318 = vmatprep.subr.bf16.mxu0 %v288
      %319 = vmatpush1.bf16.msra.mxu0 %v287
      %320 = vmatprep.subr.bf16.mxu0 %v294
      %321 = vmatpush1.bf16.msra.mxu0 %v293
      %322 = vmatprep.subr.bf16.mxu0 0
      %323 = vmatpush1.bf16.msra.mxu0 0
      %324 = vmatprep.subr.bf16.mxu0 0
      %325 = vmatpush1.bf16.msra.mxu0 0
      %326 = vmatprep.subr.bf16.mxu0 0
      %327 = vmatpush1.bf16.msra.mxu0 0
      %328 = vmatprep.subr.bf16.mxu0 0
      %329 = vmatpush1.bf16.msra.mxu0 0
      %330 = vmatprep.subr.bf16.mxu0 0
      %331 = vmatpush1.bf16.msra.mxu0 0
      %332 = vmatprep.subr.bf16.mxu0 0
      %333 = vmatpush1.bf16.msra.mxu0 0
      %334 = vmatprep.subr.bf16.mxu0 0
      %335 = vmatpush1.bf16.msra.mxu0 0
      %336 = vmatprep.subr.bf16.mxu0 0
      %337 = vmatpush1.bf16.msra.mxu0 0
      %338 = vmatprep.subr.bf16.mxu0 0
      %339 = vmatpush1.bf16.msra.mxu0 0
      %340 = vmatprep.subr.bf16.mxu0 0
      %341 = vmatpush1.bf16.msra.mxu0 0
      %342 = vmatprep.subr.bf16.mxu0 0
      %343 = vmatpush1.bf16.msra.mxu0 0
      %344 = vmatprep.subr.bf16.mxu0 0
      %345 = vmatpush1.bf16.msra.mxu0 0
      %346 = vmatprep.subr.bf16.mxu0 0
      %347 = vmatpush1.bf16.msra.mxu0 0
      %348 = vmatprep.subr.bf16.mxu0 0
      %349 = vmatpush1.bf16.msra.mxu0 0
      %350 = vmatprep.mubr.bf16.mxu0 0
      %351 = vmatmul.mubr.bf16.gmra.mrb[0].mxu0 %v313
      %v352 = vpop.f32.mrb[0].mxu0
      %v353 = vadd.f32 %v224, %v352
      %v354 = vpop.f32.mrb[0].mxu0
      %v355 = vadd.f32 %v228, %v354
      %v356 = vpop.f32.mrb[0].mxu0
      %v357 = vadd.f32 %v224, %v356
      %v358 = vpop.f32.mrb[0].mxu0
      %v359 = vadd.f32 %v228, %v358
      %360 = vmatprep.mubr.bf16.mxu0 0
      %361 = vmatmul.mubr.bf16.gmra.mrb[0].mxu0 %v316
      %v362 = vpop.f32.mrb[0].mxu0
      %v363 = vadd.f32 %v224, %v362
      %v364 = vpop.f32.mrb[0].mxu0
      %v365 = vadd.f32 %v228, %v364
      %v366 = vpop.f32.mrb[0].mxu0
      %v367 = vpop.f32.mrb[0].mxu0
      %368 = vdwg.mxu0
      %369 = vmatprep.subr.bf16.mxu0 %v290
      %370 = vmatpush1.bf16.msra.mxu0 %v289
      %371 = vmatprep.subr.bf16.mxu0 %v296
      %372 = vmatpush1.bf16.msra.mxu0 %v295
      %373 = vmatprep.subr.bf16.mxu0 0
      %374 = vmatpush1.bf16.msra.mxu0 0
      %375 = vmatprep.subr.bf16.mxu0 0
      %376 = vmatpush1.bf16.msra.mxu0 0
      %377 = vmatprep.subr.bf16.mxu0 0
      %378 = vmatpush1.bf16.msra.mxu0 0
      %379 = vmatprep.subr.bf16.mxu0 0
      %380 = vmatpush1.bf16.msra.mxu0 0
      %381 = vmatprep.subr.bf16.mxu0 0
      %382 = vmatpush1.bf16.msra.mxu0 0
      %383 = vmatprep.subr.bf16.mxu0 0
      %384 = vmatpush1.bf16.msra.mxu0 0
      %385 = vmatprep.subr.bf16.mxu0 0
      %386 = vmatpush1.bf16.msra.mxu0 0
      %387 = vmatprep.subr.bf16.mxu0 0
      %388 = vmatpush1.bf16.msra.mxu0 0
      %389 = vmatprep.subr.bf16.mxu0 0
      %390 = vmatpush1.bf16.msra.mxu0 0
      %391 = vmatprep.subr.bf16.mxu0 0
      %392 = vmatpush1.bf16.msra.mxu0 0
      %393 = vmatprep.subr.bf16.mxu0 0
      %394 = vmatpush1.bf16.msra.mxu0 0
      %395 = vmatprep.subr.bf16.mxu0 0
      %396 = vmatpush1.bf16.msra.mxu0 0
      %397 = vmatprep.subr.bf16.mxu0 0
      %398 = vmatpush1.bf16.msra.mxu0 0
      %399 = vmatprep.subr.bf16.mxu0 0
      %400 = vmatpush1.bf16.msra.mxu0 0
      %401 = vmatprep.mubr.bf16.mxu0 0
      %402 = vmatmul.mubr.bf16.gmra.mrb[0].mxu0 %v313
      %v403 = vpop.f32.mrb[0].mxu0
      %v404 = vadd.f32 %v232, %v403
      %v405 = vpop.f32.mrb[0].mxu0
      %v406 = vadd.f32 %v236, %v405
      %v407 = vpop.f32.mrb[0].mxu0
      %v408 = vadd.f32 %v232, %v407
      %v409 = vpop.f32.mrb[0].mxu0
      %v410 = vadd.f32 %v236, %v409
      %411 = vmatprep.mubr.bf16.mxu0 0
      %412 = vmatmul.mubr.bf16.gmra.mrb[0].mxu0 %v316
      %v413 = vpop.f32.mrb[0].mxu0
      %v414 = vadd.f32 %v232, %v413
      %v415 = vpop.f32.mrb[0].mxu0
      %v416 = vadd.f32 %v236, %v415
      %v417 = vpop.f32.mrb[0].mxu0
      %v418 = vpop.f32.mrb[0].mxu0
      %419 = vdwg.mxu0
      %420 = vmatprep.subr.bf16.mxu0 %v292
      %421 = vmatpush1.bf16.msra.mxu0 %v291
      %422 = vmatprep.subr.bf16.mxu0 %v298
      %423 = vmatpush1.bf16.msra.mxu0 %v297
      %424 = vmatprep.subr.bf16.mxu0 0
      %425 = vmatpush1.bf16.msra.mxu0 0
      %426 = vmatprep.subr.bf16.mxu0 0
      %427 = vmatpush1.bf16.msra.mxu0 0
      %428 = vmatprep.subr.bf16.mxu0 0
      %429 = vmatpush1.bf16.msra.mxu0 0
      %430 = vmatprep.subr.bf16.mxu0 0
      %431 = vmatpush1.bf16.msra.mxu0 0
      %432 = vmatprep.subr.bf16.mxu0 0
      %433 = vmatpush1.bf16.msra.mxu0 0
      %434 = vmatprep.subr.bf16.mxu0 0
      %435 = vmatpush1.bf16.msra.mxu0 0
      %436 = vmatprep.subr.bf16.mxu0 0
      %437 = vmatpush1.bf16.msra.mxu0 0
      %438 = vmatprep.subr.bf16.mxu0 0
      %439 = vmatpush1.bf16.msra.mxu0 0
      %440 = vmatprep.subr.bf16.mxu0 0
      %441 = vmatpush1.bf16.msra.mxu0 0
      %442 = vmatprep.subr.bf16.mxu0 0
      %443 = vmatpush1.bf16.msra.mxu0 0
      %444 = vmatprep.subr.bf16.mxu0 0
      %445 = vmatpush1.bf16.msra.mxu0 0
      %446 = vmatprep.subr.bf16.mxu0 0
      %447 = vmatpush1.bf16.msra.mxu0 0
      %448 = vmatprep.subr.bf16.mxu0 0
      %449 = vmatpush1.bf16.msra.mxu0 0
      %450 = vmatprep.subr.bf16.mxu0 0
      %451 = vmatpush1.bf16.msra.mxu0 0
      %452 = vmatprep.mubr.bf16.mxu0 0
      %453 = vmatmul.mubr.bf16.gmra.mrb[0].mxu0 %v313
      %v454 = vpop.f32.mrb[0].mxu0
      %v455 = vadd.f32 %v240, %v454
      %v456 = vpop.f32.mrb[0].mxu0
      %v457 = vadd.f32 %v244, %v456
      %v458 = vpop.f32.mrb[0].mxu0
      %v459 = vadd.f32 %v240, %v458
      %v460 = vpop.f32.mrb[0].mxu0
      %v461 = vadd.f32 %v244, %v460
      %462 = vmatprep.mubr.bf16.mxu0 0
      %463 = vmatmul.mubr.bf16.gmra.mrb[0].mxu0 %v316
      %v464 = vpop.f32.mrb[0].mxu0
      %v465 = vadd.f32 %v240, %v464
      %v466 = vpop.f32.mrb[0].mxu0
      %v467 = vadd.f32 %v244, %v466
      %v468 = vpop.f32.mrb[0].mxu0
      %v469 = vpop.f32.mrb[0].mxu0
      %470 = vdwg.mxu0
      %v471 = vmul.f32 %v353, %v353
      %v472 = vmul.f32 %v355, %v355
      %v473 = vmul.f32 %v404, %v404
      %v474 = vmul.f32 %v406, %v406
      %v475 = vmul.f32 %v455, %v455
      %v476 = vmul.f32 %v457, %v457
      %v477 = vmul.f32 %v357, %v357
      %v478 = vmul.f32 %v359, %v359
      %v479 = vmul.f32 %v408, %v408
      %v480 = vmul.f32 %v410, %v410
      %v481 = vmul.f32 %v459, %v459
      %v482 = vmul.f32 %v461, %v461
      %v483 = vmul.f32 %v363, %v363
      %v484 = vmul.f32 %v365, %v365
      %v485 = vmul.f32 %v414, %v414
      %v486 = vmul.f32 %v416, %v416
      %v487 = vmul.f32 %v465, %v465
      %v488 = vmul.f32 %v467, %v467
      %v489 = vadd.f32 %v471, %v472
      %v490 = vadd.f32 %v489, %v473
      %v491 = vadd.f32 %v490, %v474
      %v492 = vadd.f32 %v491, %v475
      %v493 = vadd.f32 %v492, %v476
      %494 = vadd.xlane.f32.xlu0 %v493
      %v495 = vpop.xlane.xlu0 %494
      %v496 = vadd.f32 %v477, %v478
      %v497 = vadd.f32 %v496, %v479
      %v498 = vadd.f32 %v497, %v480
      %v499 = vadd.f32 %v498, %v481
      %v500 = vadd.f32 %v499, %v482
      %501 = vadd.xlane.f32.xlu0 %v500
      %v502 = vpop.xlane.xlu0 %501
      %v503 = vadd.f32 %v483, %v484
      %v504 = vadd.f32 %v503, %v485
      %v505 = vadd.f32 %v504, %v486
      %v506 = vadd.f32 %v505, %v487
      %v507 = vadd.f32 %v506, %v488
      %508 = vadd.xlane.f32.xlu0 %v507
      %v509 = vpop.xlane.xlu0 %508
      %v510 = vadd.f32 %v495, 1e-12
      %v511 = vadd.f32 %v502, 1e-12
      %v512 = vadd.f32 %v509, 1e-12
      %v513 = vrsqrt.pop %v510
      %v514 = vrsqrt.pop %v511
      %v515 = vrsqrt.pop %v512
      %v516 = vpack.c.bf16 %v357, %v353
      %v517 = vpack.c.bf16 %v359, %v355
      %v518 = vpack.c.bf16 %v408, %v404
      %v519 = vpack.c.bf16 %v410, %v406
      %v520 = vpack.c.bf16 %v459, %v455
      %v521 = vpack.c.bf16 %v461, %v457
      %v522 = vpack.c.bf16 %v363, %v363
      %v523 = vpack.c.bf16 %v365, %v365
      %v524 = vpack.c.bf16 %v414, %v414
      %v525 = vpack.c.bf16 %v416, %v416
      %v526 = vpack.c.bf16 %v465, %v465
      %v527 = vpack.c.bf16 %v467, %v467
      %v528 = vld [vmem:[%s3] sm:$0xf]
      %v529 = vld [vmem:[%s3 + $0x4] sm:$0xf]
      %v530 = vld [vmem:[%s3 + $0x8] sm:$0xf]
      %v531 = vld [vmem:[%s3 + $0xc] sm:$0xf]
      %v532 = vld [vmem:[%s3 + $0x10] sm:$0xf]
      %v533 = vld [vmem:[%s3 + $0x14] sm:$0xf]
      %v534 = vld [vmem:[%s3 + $0x18] sm:$0xf]
      %v535 = vld [vmem:[%s3 + $0x1c] sm:$0xf]
      %v536 = vld [vmem:[%s3 + $0x20] sm:$0xf]
      %v537 = vld [vmem:[%s3 + $0x24] sm:$0xf]
      %v538 = vld [vmem:[%s3 + $0x28] sm:$0xf]
      %v539 = vld [vmem:[%s3 + $0x2c] sm:$0xf]
      %v540 = vld [vmem:[%s3 + $0x30] sm:$0xf]
      %v541 = vld [vmem:[%s3 + $0x34] sm:$0xf]
      %v542 = vld [vmem:[%s3 + $0x38] sm:$0xf]
      %v543 = vld [vmem:[%s3 + $0x3c] sm:$0xf]
      %v544 = vld [vmem:[%s3 + $0x40] sm:$0xf]
      %v545 = vld [vmem:[%s3 + $0x44] sm:$0xf]
      %v546 = vld [vmem:[%s3 + $0x48] sm:$0xf]
      %v547 = vld [vmem:[%s3 + $0x4c] sm:$0xf]
      %v548 = vld [vmem:[%s3 + $0x50] sm:$0xf]
      %v549 = vld [vmem:[%s3 + $0x54] sm:$0xf]
      %v550 = vld [vmem:[%s3 + $0x58] sm:$0xf]
      %v551 = vld [vmem:[%s3 + $0x5c] sm:$0xf]
      %v552 = vld [vmem:[%s3 + $0x60] sm:$0xf]
      %v553 = vld [vmem:[%s3 + $0x64] sm:$0xf]
      %v554 = vld [vmem:[%s3 + $0x68] sm:$0xf]
      %v555 = vld [vmem:[%s3 + $0x6c] sm:$0xf]
      %v556 = vld [vmem:[%s3 + $0x70] sm:$0xf]
      %v557 = vld [vmem:[%s3 + $0x74] sm:$0xf]
      %v558 = vld [vmem:[%s3 + $0x78] sm:$0xf]
      %v559 = vld [vmem:[%s3 + $0x7c] sm:$0xf]
      %v560 = vld [vmem:[%s3 + $0x80] sm:$0xf]
      %v561 = vld [vmem:[%s3 + $0x84] sm:$0xf]
      %v562 = vld [vmem:[%s3 + $0x88] sm:$0xf]
      %v563 = vld [vmem:[%s3 + $0x8c] sm:$0xf]
      %v564 = vld [vmem:[%s3 + $0x90] sm:$0xf]
      %v565 = vld [vmem:[%s3 + $0x94] sm:$0xf]
      %v566 = vld [vmem:[%s3 + $0x98] sm:$0xf]
      %v567 = vld [vmem:[%s3 + $0x9c] sm:$0xf]
      %v568 = vld [vmem:[%s3 + $0xa0] sm:$0xf]
      %v569 = vld [vmem:[%s3 + $0xa4] sm:$0xf]
      %v570 = vld [vmem:[%s3 + $0xa8] sm:$0xf]
      %v571 = vld [vmem:[%s3 + $0xac] sm:$0xf]
      %v572 = vld [vmem:[%s3 + $0xb0] sm:$0xf]
      %v573 = vld [vmem:[%s3 + $0xb4] sm:$0xf]
      %v574 = vld [vmem:[%s3 + $0xb8] sm:$0xf]
      %v575 = vld [vmem:[%s3 + $0xbc] sm:$0xf]
      %v576 = vld [vmem:[%s3 + $0xc0] sm:$0xf]
      %v577 = vld [vmem:[%s3 + $0xc4] sm:$0xf]
      %v578 = vld [vmem:[%s3 + $0xc8] sm:$0xf]
      %v579 = vld [vmem:[%s3 + $0xcc] sm:$0xf]
      %v580 = vld [vmem:[%s3 + $0xd0] sm:$0xf]
      %v581 = vld [vmem:[%s3 + $0xd4] sm:$0xf]
      %v582 = vld [vmem:[%s3 + $0xd8] sm:$0xf]
      %v583 = vld [vmem:[%s3 + $0xdc] sm:$0xf]
      %v584 = vld [vmem:[%s3 + $0xe0] sm:$0xf]
      %v585 = vld [vmem:[%s3 + $0xe4] sm:$0xf]
      %v586 = vld [vmem:[%s3 + $0xe8] sm:$0xf]
      %v587 = vld [vmem:[%s3 + $0xec] sm:$0xf]
      %v588 = vld [vmem:[%s3 + $0xf0] sm:$0xf]
      %v589 = vld [vmem:[%s3 + $0xf4] sm:$0xf]
      %v590 = vld [vmem:[%s3 + $0xf8] sm:$0xf]
      %v591 = vld [vmem:[%s3 + $0xfc] sm:$0xf]
      %v592 = vld [vmem:[%s3 + $0x100] sm:$0xf]
      %v593 = vld [vmem:[%s3 + $0x104] sm:$0xf]
      %v594 = vld [vmem:[%s3 + $0x108] sm:$0xf]
      %v595 = vld [vmem:[%s3 + $0x10c] sm:$0xf]
      %v596 = vld [vmem:[%s3 + $0x110] sm:$0xf]
      %v597 = vld [vmem:[%s3 + $0x114] sm:$0xf]
      %v598 = vld [vmem:[%s3 + $0x118] sm:$0xf]
      %v599 = vld [vmem:[%s3 + $0x11c] sm:$0xf]
      %v600 = vld [vmem:[%s3 + $0x120] sm:$0xf]
      %v601 = vld [vmem:[%s3 + $0x124] sm:$0xf]
      %v602 = vld [vmem:[%s3 + $0x128] sm:$0xf]
      %v603 = vld [vmem:[%s3 + $0x12c] sm:$0xf]
      %v604 = vld [vmem:[%s3 + $0x130] sm:$0xf]
      %v605 = vld [vmem:[%s3 + $0x134] sm:$0xf]
      %v606 = vld [vmem:[%s3 + $0x138] sm:$0xf]
      %v607 = vld [vmem:[%s3 + $0x13c] sm:$0xf]
      %v608 = vld [vmem:[%s3 + $0x140] sm:$0xf]
      %v609 = vld [vmem:[%s3 + $0x144] sm:$0xf]
      %v610 = vld [vmem:[%s3 + $0x148] sm:$0xf]
      %v611 = vld [vmem:[%s3 + $0x14c] sm:$0xf]
      %v612 = vld [vmem:[%s3 + $0x150] sm:$0xf]
      %v613 = vld [vmem:[%s3 + $0x154] sm:$0xf]
      %v614 = vld [vmem:[%s3 + $0x158] sm:$0xf]
      %v615 = vld [vmem:[%s3 + $0x15c] sm:$0xf]
      %v616 = vld [vmem:[%s3 + $0x160] sm:$0xf]
      %v617 = vld [vmem:[%s3 + $0x164] sm:$0xf]
      %v618 = vld [vmem:[%s3 + $0x168] sm:$0xf]
      %v619 = vld [vmem:[%s3 + $0x16c] sm:$0xf]
      %v620 = vld [vmem:[%s3 + $0x170] sm:$0xf]
      %v621 = vld [vmem:[%s3 + $0x174] sm:$0xf]
      %v622 = vld [vmem:[%s3 + $0x178] sm:$0xf]
      %v623 = vld [vmem:[%s3 + $0x17c] sm:$0xf]
      %v720 = vunpack.c.l.b16 %v528
      %v721 = vunpack.c.l.b16 %v529
      %v722 = vunpack.c.l.b16 %v530
      %v723 = vunpack.c.l.b16 %v531
      %v724 = vunpack.c.l.b16 %v532
      %v725 = vunpack.c.l.b16 %v533
      %v726 = vunpack.c.l.b16 %v534
      %v727 = vunpack.c.l.b16 %v535
      %v728 = vunpack.c.l.b16 %v536
      %v729 = vunpack.c.l.b16 %v537
      %v730 = vunpack.c.l.b16 %v538
      %v731 = vunpack.c.l.b16 %v539
      %v732 = vunpack.c.l.b16 %v540
      %v733 = vunpack.c.l.b16 %v541
      %v734 = vunpack.c.l.b16 %v542
      %v735 = vunpack.c.l.b16 %v543
      %v736 = vunpack.c.l.b16 %v544
      %v737 = vunpack.c.l.b16 %v545
      %v738 = vunpack.c.l.b16 %v546
      %v739 = vunpack.c.l.b16 %v547
      %v740 = vunpack.c.l.b16 %v548
      %v741 = vunpack.c.l.b16 %v549
      %v742 = vunpack.c.l.b16 %v550
      %v743 = vunpack.c.l.b16 %v551
      %v744 = vunpack.c.l.b16 %v552
      %v745 = vunpack.c.l.b16 %v553
      %v746 = vunpack.c.l.b16 %v554
      %v747 = vunpack.c.l.b16 %v555
      %v748 = vunpack.c.l.b16 %v556
      %v749 = vunpack.c.l.b16 %v557
      %v750 = vunpack.c.l.b16 %v558
      %v751 = vunpack.c.l.b16 %v559
      %v752 = vunpack.c.l.b16 %v560
      %v753 = vunpack.c.l.b16 %v561
      %v754 = vunpack.c.l.b16 %v562
      %v755 = vunpack.c.l.b16 %v563
      %v756 = vunpack.c.l.b16 %v564
      %v757 = vunpack.c.l.b16 %v565
      %v758 = vunpack.c.l.b16 %v566
      %v759 = vunpack.c.l.b16 %v567
      %v760 = vunpack.c.l.b16 %v568
      %v761 = vunpack.c.l.b16 %v569
      %v762 = vunpack.c.l.b16 %v570
      %v763 = vunpack.c.l.b16 %v571
      %v764 = vunpack.c.l.b16 %v572
      %v765 = vunpack.c.l.b16 %v573
      %v766 = vunpack.c.l.b16 %v574
      %v767 = vunpack.c.l.b16 %v575
      %v768 = vunpack.c.l.b16 %v576
      %v769 = vunpack.c.l.b16 %v577
      %v770 = vunpack.c.l.b16 %v578
      %v771 = vunpack.c.l.b16 %v579
      %v772 = vunpack.c.l.b16 %v580
      %v773 = vunpack.c.l.b16 %v581
      %v774 = vunpack.c.l.b16 %v582
      %v775 = vunpack.c.l.b16 %v583
      %v776 = vunpack.c.l.b16 %v584
      %v777 = vunpack.c.l.b16 %v585
      %v778 = vunpack.c.l.b16 %v586
      %v779 = vunpack.c.l.b16 %v587
      %v780 = vunpack.c.l.b16 %v588
      %v781 = vunpack.c.l.b16 %v589
      %v782 = vunpack.c.l.b16 %v590
      %v783 = vunpack.c.l.b16 %v591
      %v784 = vunpack.c.l.b16 %v592
      %v785 = vunpack.c.l.b16 %v593
      %v786 = vunpack.c.l.b16 %v594
      %v787 = vunpack.c.l.b16 %v595
      %v788 = vunpack.c.l.b16 %v596
      %v789 = vunpack.c.l.b16 %v597
      %v790 = vunpack.c.l.b16 %v598
      %v791 = vunpack.c.l.b16 %v599
      %v792 = vunpack.c.l.b16 %v600
      %v793 = vunpack.c.l.b16 %v601
      %v794 = vunpack.c.l.b16 %v602
      %v795 = vunpack.c.l.b16 %v603
      %v796 = vunpack.c.l.b16 %v604
      %v797 = vunpack.c.l.b16 %v605
      %v798 = vunpack.c.l.b16 %v606
      %v799 = vunpack.c.l.b16 %v607
      %v800 = vunpack.c.l.b16 %v608
      %v801 = vunpack.c.l.b16 %v609
      %v802 = vunpack.c.l.b16 %v610
      %v803 = vunpack.c.l.b16 %v611
      %v804 = vunpack.c.l.b16 %v612
      %v805 = vunpack.c.l.b16 %v613
      %v806 = vunpack.c.l.b16 %v614
      %v807 = vunpack.c.l.b16 %v615
      %v808 = vunpack.c.l.b16 %v616
      %v809 = vunpack.c.l.b16 %v617
      %v810 = vunpack.c.l.b16 %v618
      %v811 = vunpack.c.l.b16 %v619
      %v812 = vunpack.c.l.b16 %v620
      %v813 = vunpack.c.l.b16 %v621
      %v814 = vunpack.c.l.b16 %v622
      %v815 = vunpack.c.l.b16 %v623
      %v816 = vpack.c.b16 %v721, %v720
      %v817 = vpack.c.b16 %v723, %v722
      %v818 = vpack.c.b16 %v725, %v724
      %v819 = vpack.c.b16 %v727, %v726
      %v820 = vpack.c.b16 %v729, %v728
      %v821 = vpack.c.b16 %v731, %v730
      %v822 = vpack.c.b16 %v733, %v732
      %v823 = vpack.c.b16 %v735, %v734
      %v824 = vpack.c.b16 %v737, %v736
      %v825 = vpack.c.b16 %v739, %v738
      %v826 = vpack.c.b16 %v741, %v740
      %v827 = vpack.c.b16 %v743, %v742
      %v828 = vpack.c.b16 %v745, %v744
      %v829 = vpack.c.b16 %v747, %v746
      %v830 = vpack.c.b16 %v749, %v748
      %v831 = vpack.c.b16 %v751, %v750
      %v832 = vpack.c.b16 %v753, %v752
      %v833 = vpack.c.b16 %v755, %v754
      %v834 = vpack.c.b16 %v757, %v756
      %v835 = vpack.c.b16 %v759, %v758
      %v836 = vpack.c.b16 %v761, %v760
      %v837 = vpack.c.b16 %v763, %v762
      %v838 = vpack.c.b16 %v765, %v764
      %v839 = vpack.c.b16 %v767, %v766
      %v840 = vpack.c.b16 %v769, %v768
      %v841 = vpack.c.b16 %v771, %v770
      %v842 = vpack.c.b16 %v773, %v772
      %v843 = vpack.c.b16 %v775, %v774
      %v844 = vpack.c.b16 %v777, %v776
      %v845 = vpack.c.b16 %v779, %v778
      %v846 = vpack.c.b16 %v781, %v780
      %v847 = vpack.c.b16 %v783, %v782
      %v848 = vpack.c.b16 %v785, %v784
      %v849 = vpack.c.b16 %v787, %v786
      %v850 = vpack.c.b16 %v789, %v788
      %v851 = vpack.c.b16 %v791, %v790
      %v852 = vpack.c.b16 %v793, %v792
      %v853 = vpack.c.b16 %v795, %v794
      %v854 = vpack.c.b16 %v797, %v796
      %v855 = vpack.c.b16 %v799, %v798
      %v856 = vpack.c.b16 %v801, %v800
      %v857 = vpack.c.b16 %v803, %v802
      %v858 = vpack.c.b16 %v805, %v804
      %v859 = vpack.c.b16 %v807, %v806
      %v860 = vpack.c.b16 %v809, %v808
      %v861 = vpack.c.b16 %v811, %v810
      %v862 = vpack.c.b16 %v813, %v812
      %v863 = vpack.c.b16 %v815, %v814
      %912 = vmatprep.subr.bf16.mxu0 0
      %913 = vmatpush1.bf16.msra.mxu0 %v816
      %914 = vmatprep.subr.bf16.mxu0 0
      %915 = vmatpush1.bf16.msra.mxu0 %v817
      %916 = vmatprep.subr.bf16.mxu0 0
      %917 = vmatpush1.bf16.msra.mxu0 %v818
      %918 = vmatprep.subr.bf16.mxu0 0
      %919 = vmatpush1.bf16.msra.mxu0 %v819
      %920 = vmatprep.subr.bf16.mxu0 0
      %921 = vmatpush1.bf16.msra.mxu0 %v820
      %922 = vmatprep.subr.bf16.mxu0 0
      %923 = vmatpush1.bf16.msra.mxu0 %v821
      %924 = vmatprep.subr.bf16.mxu0 0
      %925 = vmatpush1.bf16.msra.mxu0 %v822
      %926 = vmatprep.subr.bf16.mxu0 0
      %927 = vmatpush1.bf16.msra.mxu0 %v823
      %928 = vmatprep.subr.bf16.mxu0 0
      %929 = vmatpush1.bf16.msra.mxu0 %v824
      %930 = vmatprep.subr.bf16.mxu0 0
      %931 = vmatpush1.bf16.msra.mxu0 %v825
      %932 = vmatprep.subr.bf16.mxu0 0
      %933 = vmatpush1.bf16.msra.mxu0 %v826
      %934 = vmatprep.subr.bf16.mxu0 0
      %935 = vmatpush1.bf16.msra.mxu0 %v827
      %936 = vmatprep.subr.bf16.mxu0 0
      %937 = vmatpush1.bf16.msra.mxu0 %v828
      %938 = vmatprep.subr.bf16.mxu0 0
      %939 = vmatpush1.bf16.msra.mxu0 %v829
      %940 = vmatprep.subr.bf16.mxu0 0
      %941 = vmatpush1.bf16.msra.mxu0 %v830
      %942 = vmatprep.subr.bf16.mxu0 0
      %943 = vmatpush1.bf16.msra.mxu0 %v831
      %944 = vmatprep.mubr.bf16.mxu0 %v517
      %945 = vmatmul.mubr.bf16.gmra.mrb[0].mxu0 %v516
      %v946 = vpop.f32.mrb[0].mxu0
      %v947 = vadd.f32 0.0, %v946
      %v948 = vpop.f32.mrb[0].mxu0
      %v949 = vpop.f32.mrb[0].mxu0
      %v950 = vadd.f32 0.0, %v949
      %v951 = vpop.f32.mrb[0].mxu0
      %952 = vmatprep.mubr.bf16.mxu0 %v523
      %953 = vmatmul.mubr.bf16.gmra.mrb[0].mxu0 %v522
      %v954 = vpop.f32.mrb[0].mxu0
      %v955 = vadd.f32 0.0, %v954
      %v956 = vpop.f32.mrb[0].mxu0
      %v957 = vpop.f32.mrb[0].mxu0
      %v958 = vpop.f32.mrb[0].mxu0
      %959 = vdwg.mxu0
      %960 = vmatprep.subr.bf16.mxu0 0
      %961 = vmatpush1.bf16.msra.mxu0 %v832
      %962 = vmatprep.subr.bf16.mxu0 0
      %963 = vmatpush1.bf16.msra.mxu0 %v833
      %964 = vmatprep.subr.bf16.mxu0 0
      %965 = vmatpush1.bf16.msra.mxu0 %v834
      %966 = vmatprep.subr.bf16.mxu0 0
      %967 = vmatpush1.bf16.msra.mxu0 %v835
      %968 = vmatprep.subr.bf16.mxu0 0
      %969 = vmatpush1.bf16.msra.mxu0 %v836
      %970 = vmatprep.subr.bf16.mxu0 0
      %971 = vmatpush1.bf16.msra.mxu0 %v837
      %972 = vmatprep.subr.bf16.mxu0 0
      %973 = vmatpush1.bf16.msra.mxu0 %v838
      %974 = vmatprep.subr.bf16.mxu0 0
      %975 = vmatpush1.bf16.msra.mxu0 %v839
      %976 = vmatprep.subr.bf16.mxu0 0
      %977 = vmatpush1.bf16.msra.mxu0 %v840
      %978 = vmatprep.subr.bf16.mxu0 0
      %979 = vmatpush1.bf16.msra.mxu0 %v841
      %980 = vmatprep.subr.bf16.mxu0 0
      %981 = vmatpush1.bf16.msra.mxu0 %v842
      %982 = vmatprep.subr.bf16.mxu0 0
      %983 = vmatpush1.bf16.msra.mxu0 %v843
      %984 = vmatprep.subr.bf16.mxu0 0
      %985 = vmatpush1.bf16.msra.mxu0 %v844
      %986 = vmatprep.subr.bf16.mxu0 0
      %987 = vmatpush1.bf16.msra.mxu0 %v845
      %988 = vmatprep.subr.bf16.mxu0 0
      %989 = vmatpush1.bf16.msra.mxu0 %v846
      %990 = vmatprep.subr.bf16.mxu0 0
      %991 = vmatpush1.bf16.msra.mxu0 %v847
      %992 = vmatprep.mubr.bf16.mxu0 %v519
      %993 = vmatmul.mubr.bf16.gmra.mrb[0].mxu0 %v518
      %v994 = vpop.f32.mrb[0].mxu0
      %v995 = vadd.f32 %v947, %v994
      %v996 = vpop.f32.mrb[0].mxu0
      %v997 = vpop.f32.mrb[0].mxu0
      %v998 = vadd.f32 %v950, %v997
      %v999 = vpop.f32.mrb[0].mxu0
      %1000 = vmatprep.mubr.bf16.mxu0 %v525
      %1001 = vmatmul.mubr.bf16.gmra.mrb[0].mxu0 %v524
      %v1002 = vpop.f32.mrb[0].mxu0
      %v1003 = vadd.f32 %v955, %v1002
      %v1004 = vpop.f32.mrb[0].mxu0
      %v1005 = vpop.f32.mrb[0].mxu0
      %v1006 = vpop.f32.mrb[0].mxu0
      %1007 = vdwg.mxu0
      %1008 = vmatprep.subr.bf16.mxu0 0
      %1009 = vmatpush1.bf16.msra.mxu0 %v848
      %1010 = vmatprep.subr.bf16.mxu0 0
      %1011 = vmatpush1.bf16.msra.mxu0 %v849
      %1012 = vmatprep.subr.bf16.mxu0 0
      %1013 = vmatpush1.bf16.msra.mxu0 %v850
      %1014 = vmatprep.subr.bf16.mxu0 0
      %1015 = vmatpush1.bf16.msra.mxu0 %v851
      %1016 = vmatprep.subr.bf16.mxu0 0
      %1017 = vmatpush1.bf16.msra.mxu0 %v852
      %1018 = vmatprep.subr.bf16.mxu0 0
      %1019 = vmatpush1.bf16.msra.mxu0 %v853
      %1020 = vmatprep.subr.bf16.mxu0 0
      %1021 = vmatpush1.bf16.msra.mxu0 %v854
      %1022 = vmatprep.subr.bf16.mxu0 0
      %1023 = vmatpush1.bf16.msra.mxu0 %v855
      %1024 = vmatprep.subr.bf16.mxu0 0
      %1025 = vmatpush1.bf16.msra.mxu0 %v856
      %1026 = vmatprep.subr.bf16.mxu0 0
      %1027 = vmatpush1.bf16.msra.mxu0 %v857
      %1028 = vmatprep.subr.bf16.mxu0 0
      %1029 = vmatpush1.bf16.msra.mxu0 %v858
      %1030 = vmatprep.subr.bf16.mxu0 0
      %1031 = vmatpush1.bf16.msra.mxu0 %v859
      %1032 = vmatprep.subr.bf16.mxu0 0
      %1033 = vmatpush1.bf16.msra.mxu0 %v860
      %1034 = vmatprep.subr.bf16.mxu0 0
      %1035 = vmatpush1.bf16.msra.mxu0 %v861
      %1036 = vmatprep.subr.bf16.mxu0 0
      %1037 = vmatpush1.bf16.msra.mxu0 %v862
      %1038 = vmatprep.subr.bf16.mxu0 0
      %1039 = vmatpush1.bf16.msra.mxu0 %v863
      %1040 = vmatprep.mubr.bf16.mxu0 %v521
      %1041 = vmatmul.mubr.bf16.gmra.mrb[0].mxu0 %v520
      %v1042 = vpop.f32.mrb[0].mxu0
      %v1043 = vadd.f32 %v995, %v1042
      %v1044 = vpop.f32.mrb[0].mxu0
      %v1045 = vpop.f32.mrb[0].mxu0
      %v1046 = vadd.f32 %v998, %v1045
      %v1047 = vpop.f32.mrb[0].mxu0
      %1048 = vmatprep.mubr.bf16.mxu0 %v527
      %1049 = vmatmul.mubr.bf16.gmra.mrb[0].mxu0 %v526
      %v1050 = vpop.f32.mrb[0].mxu0
      %v1051 = vadd.f32 %v1003, %v1050
      %v1052 = vpop.f32.mrb[0].mxu0
      %v1053 = vpop.f32.mrb[0].mxu0
      %v1054 = vpop.f32.mrb[0].mxu0
      %1055 = vdwg.mxu0
      %v1056 = vmul.f32 %v513, 10.0
      %v1057 = vmul.f32 %v514, 10.0
      %v1058 = vmul.f32 %v515, 10.0
      %v1059 = vmul.f32 %v1043, %v1056
      %v1060 = vmul.f32 %v1046, %v1057
      %v1061 = vmul.f32 %v1051, %v1058
      %1062 = vst [vmem:[%s199] sm:$0xff] %v1059
      %1063 = vst [vmem:[%s199 + $0x8] sm:$0xff] %v1060
      %1064 = vst [vmem:[%s199 + $0x10] sm:$0xff] %v1061
      %s1065 = smul.u32 3, %s15
      %p1066 = scmp.lt.s32.totalorder %s1065, 5
      %s1067 = scalar_select %p1066, %s1065, 5
      %s1068 = smul.addr %s1067, 8
      %s1069 = scalar_lea.vmem %s4, %s1068
      // Predicated region
      $region37: #{hoi_forward.5} parent=35 // pred_check
        %p1070 = pneg %p122
      $region38: #{hoi_forward.5} parent=35 // pred_check_branch
        %1072 = sbr.rel (%p1070) target = $region40
      $region39: #{hoi_forward.5} parent=35 // pred_region
        %s1073 = smul.u32 3, %s15
      $region40: #{hoi_forward.5} parent=35 // pred_fallthru
        _
    $region36: #{hoi_forward.5} parent=5 // pred_fallthru
      _
    %p1074 = scmp.le.s32.totalorder 2, %s10
    // Predicated region
    $region41: #{hoi_forward.5} parent=5 // pred_check
      %p1075 = pneg %p1074
    $region42: #{hoi_forward.5} parent=5 // pred_check_branch
      %1077 = sbr.rel (%p1075) target = $region44
    $region43: #{hoi_forward.5} parent=5 // pred_region
      %s1078 = ssub.s32 %s10, 2
      // Predicated region
      $region45: #{hoi_forward.5} parent=43 // pred_check
        %p1079 = pneg %p128
      $region46: #{hoi_forward.5} parent=43 // pred_check_branch
        %1081 = sbr.rel (%p1079) target = $region48
      $region47: #{hoi_forward.5} parent=43 // pred_region
        %s1082 = smul.u32 3, %s16
        %p1083 = scmp.lt.s32.totalorder %s1082, 5
        %s1084 = scalar_select %p1083, %s1082, 5
        %s1085 = smul.addr %s1084, 8
        %s1086 = scalar_lea.vmem %s4, %s1085
      $region48: #{hoi_forward.5} parent=43 // pred_fallthru
        _
    $region44: #{hoi_forward.5} parent=5 // pred_fallthru
      _
  $region6: #{hoi_forward.5} parent=0 // loop_footer
    %s14 = sadd.s32 1, %s10
  $region7: #{hoi_forward.5} parent=0 // loop_footer_branch
    %9 = sbr.rel target = $region3
  $region8: #{hoi_forward.5} parent=0 // loop_exit
    _

</llo_original>
